<compile_context>
chip_gen: v7x
topology: tpu7x:2x2x1
jax: 0.10.0
libtpu: 0.0.40
codegen_flags: <defaults>
</compile_context>

<pallas_src>
import math

import jax
import jax.numpy as jnp
from jax.experimental import pallas as pl
from jax.experimental.pallas import tpu as pltpu

# ---- static model sizes (small, consistent with the module's forward) ----
B, C, H, W = 2, 4, 16, 16
DIN = C * H * W          # 1024
HID = 32
Z = 8
K = 2
C_CURV = 1.0             # kwargs 'c' of HVAE
_SP_THRESH = 20.0        # softplus linear-branch threshold (matches torch)

# TODO(synk): latent_mean / latent_logvar (nn.Parameter) and the hyperbolic prior
# are only exercised by generate()/latent_param, not forward(); not ported. The
# posterior is modeled as a Euclidean Normal reparameterization; if the torch
# posterior is a wrapped/hyperbolic normal its exp-map step is not modeled here.


def _stable_softplus(x):
    # log1p(exp(x)) with a linear branch above the threshold (torch semantics);
    # clamp inside exp so the untaken branch never produces inf.
    safe = jnp.minimum(x, _SP_THRESH)
    return jnp.where(x > _SP_THRESH, x, jnp.log1p(jnp.exp(safe)))


def _hvae_kernel(x_ref, w1_ref, b1_ref, whead_ref, bhead_ref,
                 wd1_ref, bd1_ref, wd2_ref, bd2_ref, eps_ref, out_ref):
    # ---------------- encoder: bf16 MXU operands, f32 accumulate ----------------
    x = x_ref[...].astype(jnp.bfloat16)                 # in-kernel cast (VPU slack)
    h = jnp.dot(x, w1_ref[...],
                preferred_element_type=jnp.float32) + b1_ref[...]
    h = jnp.maximum(h, 0.0)                             # (B, HID) f32

    # fused (mu | raw_sigma) head: single (HID, 2Z) matmul, sliced afterwards
    head = jnp.dot(h, whead_ref[...],
                   preferred_element_type=jnp.float32) + bhead_ref[...]
    mu = head[:, :Z]                                    # (B, Z)
    sigma = C_CURV * _stable_softplus(head[:, Z:])      # posterior scale (incl. c)

    # small-output rows: zero once, then direct narrow slice stores (no concats)
    out_ref[pl.ds(K * B, K * B), :] = jnp.zeros((K * B, DIN), jnp.float32)
    out_ref[pl.ds(K * B, B), pl.ds(Z, Z)] = mu
    out_ref[pl.ds(K * B, B), pl.ds(2 * Z, Z)] = sigma

    # ---- reparameterized rsample + decoder, unrolled over K (no relayouts) ----
    for k in range(K):
        z_k = mu + sigma * eps_ref[pl.ds(k * B, B), :]                 # (B, Z)
        out_ref[pl.ds(K * B + k * B, B), pl.ds(0, Z)] = z_k
        hd = jnp.maximum(
            jnp.dot(z_k, wd1_ref[...],
                    preferred_element_type=jnp.float32) + bd1_ref[...], 0.0)
        dm = jnp.dot(hd.astype(jnp.bfloat16), wd2_ref[...],
                     preferred_element_type=jnp.float32) + bd2_ref[...]
        out_ref[pl.ds(k * B, B), :] = dm                # (B, DIN) lane-dense store


def prepare_params(params):
    """One-time conversion to kernel-ready dtype/layout (hoisted out of forward)."""
    (w1, b1, wmu, bmu, wsig, bsig, wd1, bd1, wd2, bd2) = params
    return (w1.astype(jnp.bfloat16),                    # MXU operand
            b1,
            jnp.concatenate([wmu, wsig], axis=1),       # fused (mu | raw_sigma) head
            jnp.concatenate([bmu, bsig], axis=1),
            wd1, bd1,
            wd2.astype(jnp.bfloat16),                   # MXU operand
            bd2)


def _hvae_pallas(x_flat_nb, eps_nb, kparams):
    """x_flat_nb: (NB, B, DIN) f32, eps_nb: (NB, K*B, Z) f32 -> (NB, 2KB, DIN) slab."""
    NB = x_flat_nb.shape[0]
    weights = kparams

    def resident(arr):
        # same block every grid step -> weight stays VMEM-resident, one DMA total
        nd = arr.ndim

        def im(i):
            return (0,) * nd
        return pl.BlockSpec(arr.shape, im)

    in_specs = ([pl.BlockSpec((None, B, DIN), lambda i: (i, 0, 0))]
                + [resident(w) for w in weights]
                + [pl.BlockSpec((None, K * B, Z), lambda i: (i, 0, 0))])
    out_spec = pl.BlockSpec((None, 2 * K * B, DIN), lambda i: (i, 0, 0))
    out_shape = jax.ShapeDtypeStruct((NB, 2 * K * B, DIN), jnp.float32)

    flops = 2 * NB * (B * DIN * HID + B * HID * 2 * Z
                      + K * B * Z * HID + K * B * HID * DIN)
    bytes_accessed = (sum(int(w.size) * w.dtype.itemsize for w in weights)
                      + int(x_flat_nb.size) * x_flat_nb.dtype.itemsize
                      + int(eps_nb.size) * eps_nb.dtype.itemsize
                      + NB * 2 * K * B * DIN * 4)

    return pl.pallas_call(
        _hvae_kernel,
        grid=(NB,),
        in_specs=in_specs,
        out_specs=out_spec,
        out_shape=out_shape,
        compiler_params=pltpu.CompilerParams(dimension_semantics=("parallel",)),
        cost_estimate=pl.CostEstimate(flops=flops,
                                      transcendentals=2 * NB * B * Z,
                                      bytes_accessed=bytes_accessed),
    )(x_flat_nb, *weights, eps_nb)


@jax.jit
def hvae_forward(x_nchw, eps, kparams):
    """Single forward: x (B,C,H,W), eps (K,B,Z) -> (mu, sigma, z, dec_mean)."""
    x_flat = x_nchw.reshape(1, B, DIN)                  # f32; bf16 cast in-kernel
    eps2 = eps.reshape(1, K * B, Z)
    slab = _hvae_pallas(x_flat, eps2, kparams)[0]       # (2*K*B, DIN)
    dec_mean = slab[:K * B].reshape(K, B, DIN)
    small = slab[K * B:]
    z = small[:, :Z].reshape(K, B, Z)
    mu = small[:B, Z:2 * Z]
    sigma = small[:B, 2 * Z:3 * Z]
    return mu, sigma, z, dec_mean


@jax.jit
def hvae_forward_batched(x_nb, eps_nb, kparams):
    """NB stacked forwards in one pallas_call (grid axis amortizes launch + weight DMA)."""
    NB = x_nb.shape[0]
    slab = _hvae_pallas(x_nb.reshape(NB, B, DIN),
                        eps_nb.reshape(NB, K * B, Z), kparams)
    dec_mean = slab[:, :K * B, :].reshape(NB, K, B, DIN)
    small = slab[:, K * B:, :]
    z = small[:, :, :Z].reshape(NB, K, B, Z)
    mu = small[:, :B, Z:2 * Z]
    sigma = small[:, :B, 2 * Z:3 * Z]
    return mu, sigma, z, dec_mean


def _reference_forward(x_nchw, params, eps):
    # plain-JAX reference of the same math (same bf16 MXU-operand quantization)
    (w1, b1, wmu, bmu, wsig, bsig, wd1, bd1, wd2, bd2) = params
    x = x_nchw.reshape(B, DIN).astype(jnp.bfloat16)
    h = jnp.maximum(
        jnp.dot(x, w1.astype(jnp.bfloat16),
                preferred_element_type=jnp.float32) + b1, 0.0)
    head = (jnp.dot(h, jnp.concatenate([wmu, wsig], axis=1),
                    preferred_element_type=jnp.float32)
            + jnp.concatenate([bmu, bsig], axis=1))
    mu, raw = head[:, :Z], head[:, Z:]
    sigma = C_CURV * jnp.where(raw > _SP_THRESH, raw,
                               jnp.log1p(jnp.exp(jnp.minimum(raw, _SP_THRESH))))
    z = mu[None] + sigma[None] * eps
    hd = jnp.maximum(
        jnp.einsum("kbz,zh->kbh", z, wd1,
                   preferred_element_type=jnp.float32) + bd1, 0.0)
    dm = jnp.einsum("kbh,hd->kbd", hd.astype(jnp.bfloat16),
                    wd2.astype(jnp.bfloat16),
                    preferred_element_type=jnp.float32) + bd2
    return mu, sigma, z, dm


def _init_params(key):
    ks = jax.random.split(key, 5)

    def lin(kw, fan_in, fan_out):
        s = 1.0 / math.sqrt(fan_in)
        w = jax.random.uniform(kw, (fan_in, fan_out), jnp.float32, -s, s)
        b = jnp.zeros((1, fan_out), jnp.float32)
        return w, b

    w1, b1 = lin(ks[0], DIN, HID)
    wmu, bmu = lin(ks[1], HID, Z)
    wsig, bsig = lin(ks[2], HID, Z)
    wd1, bd1 = lin(ks[3], Z, HID)
    wd2, bd2 = lin(ks[4], HID, DIN)
    return (w1, b1, wmu, bmu, wsig, bsig, wd1, bd1, wd2, bd2)


if __name__ == "__main__":
    root = jax.random.PRNGKey(0)
    k_x, k_eps, k_p, k_xb, k_eb = jax.random.split(root, 5)

    x = jax.random.normal(k_x, (B, C, H, W), jnp.float32)
    eps = jax.random.normal(k_eps, (K, B, Z), jnp.float32)
    params = _init_params(k_p)
    kparams = prepare_params(params)     # one-time, hoisted out of the call path

    # ---- single forward (module semantics) ----
    outs = jax.block_until_ready(hvae_forward(x, eps, kparams))
    ref = _reference_forward(x, params, eps)
    for got, want in zip(outs, ref):
        assert got.shape == want.shape and got.dtype == want.dtype
        assert jnp.allclose(got, want, atol=1e-3, rtol=1e-3), \
            float(jnp.max(jnp.abs(got - want)))

    # ---- batched path: NB microbatches in one pallas_call (grid axis) ----
    NB = 4
    x_nb = jax.random.normal(k_xb, (NB, B, C, H, W), jnp.float32)
    eps_nb = jax.random.normal(k_eb, (NB, K, B, Z), jnp.float32)
    mu_nb, sig_nb, z_nb, dm_nb = jax.block_until_ready(
        hvae_forward_batched(x_nb, eps_nb, kparams))
    for n in range(NB):
        ref_n = _reference_forward(x_nb[n], params, eps_nb[n])
        for got, want in zip((mu_nb[n], sig_nb[n], z_nb[n], dm_nb[n]), ref_n):
            assert got.shape == want.shape
            assert jnp.allclose(got, want, atol=1e-3, rtol=1e-3), \
                float(jnp.max(jnp.abs(got - want)))

    print("KERNEL_OK")
</pallas_src>

<mosaic_0001>
module attributes {stable_mosaic.version = 11 : i64} {
  func.func @_hvae_kernel(%arg0: i32, %arg1: memref<1x2x1024xf32, #tpu.memory_space<vmem>>, %arg2: memref<1024x32xbf16, #tpu.memory_space<vmem>>, %arg3: memref<1x32xf32, #tpu.memory_space<vmem>>, %arg4: memref<32x16xf32, #tpu.memory_space<vmem>>, %arg5: memref<1x16xf32, #tpu.memory_space<vmem>>, %arg6: memref<8x32xf32, #tpu.memory_space<vmem>>, %arg7: memref<1x32xf32, #tpu.memory_space<vmem>>, %arg8: memref<32x1024xbf16, #tpu.memory_space<vmem>>, %arg9: memref<1x1024xf32, #tpu.memory_space<vmem>>, %arg10: memref<1x4x8xf32, #tpu.memory_space<vmem>>, %arg11: memref<1x8x1024xf32, #tpu.memory_space<vmem>>) attributes {dimension_semantics = [#tpu.dimension_semantics<parallel>], iteration_bounds = array<i64: 1>, scalar_prefetch = 0 : i64, scratch_operands = 0 : i64, tpu.core_type = #tpu.core_type<tc>, window_params = [{transform_indices = @transform_0, window_bounds = array<i64: 1, 2, 1024>}, {pipeline_mode = #tpu.pipeline_mode<synchronous>, transform_indices = @transform_1, window_bounds = array<i64: 1024, 32>}, {pipeline_mode = #tpu.pipeline_mode<synchronous>, transform_indices = @transform_2, window_bounds = array<i64: 1, 32>}, {pipeline_mode = #tpu.pipeline_mode<synchronous>, transform_indices = @transform_3, window_bounds = array<i64: 32, 16>}, {pipeline_mode = #tpu.pipeline_mode<synchronous>, transform_indices = @transform_4, window_bounds = array<i64: 1, 16>}, {pipeline_mode = #tpu.pipeline_mode<synchronous>, transform_indices = @transform_5, window_bounds = array<i64: 8, 32>}, {pipeline_mode = #tpu.pipeline_mode<synchronous>, transform_indices = @transform_6, window_bounds = array<i64: 1, 32>}, {pipeline_mode = #tpu.pipeline_mode<synchronous>, transform_indices = @transform_7, window_bounds = array<i64: 32, 1024>}, {pipeline_mode = #tpu.pipeline_mode<synchronous>, transform_indices = @transform_8, window_bounds = array<i64: 1, 1024>}, {transform_indices = @transform_9, window_bounds = array<i64: 1, 4, 8>}, {transform_indices = @transform_10, window_bounds = array<i64: 1, 8, 1024>}]} {
    %c0 = arith.constant 0 : index
    %c0_0 = arith.constant 0 : index
    %c0_1 = arith.constant 0 : index
    %0 = vector.load %arg1[%c0, %c0_0, %c0_1] : memref<1x2x1024xf32, #tpu.memory_space<vmem>>, vector<1x2x1024xf32>
    %1 = vector.shape_cast %0 : vector<1x2x1024xf32> to vector<2x1024xf32>
    %2 = arith.truncf %1 : vector<2x1024xf32> to vector<2x1024xbf16>
    %c0_2 = arith.constant 0 : index
    %c0_3 = arith.constant 0 : index
    %3 = vector.load %arg2[%c0_2, %c0_3] : memref<1024x32xbf16, #tpu.memory_space<vmem>>, vector<1024x32xbf16>
    %cst = arith.constant dense<0.000000e+00> : vector<2x32xf32>
    %4 = tpu.matmul %2, %3, %cst {dimension_numbers = #tpu.dot_dimension_numbers<[1], [0], [0], [1], [0, 0, 1, 1], [], []>} : vector<2x1024xbf16>, vector<1024x32xbf16>, vector<2x32xf32> -> vector<2x32xf32>
    %c0_4 = arith.constant 0 : index
    %c0_5 = arith.constant 0 : index
    %5 = vector.load %arg3[%c0_4, %c0_5] : memref<1x32xf32, #tpu.memory_space<vmem>>, vector<1x32xf32>
    %6 = vector.broadcast %5 : vector<1x32xf32> to vector<2x32xf32>
    %7 = arith.addf %4, %6 : vector<2x32xf32>
    %cst_6 = arith.constant 0.000000e+00 : f32
    %8 = vector.broadcast %cst_6 : f32 to vector<2x32xf32>
    %9 = arith.maximumf %7, %8 : vector<2x32xf32>
    %c0_7 = arith.constant 0 : index
    %c0_8 = arith.constant 0 : index
    %10 = vector.load %arg4[%c0_7, %c0_8] : memref<32x16xf32, #tpu.memory_space<vmem>>, vector<32x16xf32>
    %cst_9 = arith.constant dense<0.000000e+00> : vector<2x16xf32>
    %11 = tpu.matmul %9, %10, %cst_9 {dimension_numbers = #tpu.dot_dimension_numbers<[1], [0], [0], [1], [0, 0, 1, 1], [], []>} : vector<2x32xf32>, vector<32x16xf32>, vector<2x16xf32> -> vector<2x16xf32>
    %c0_10 = arith.constant 0 : index
    %c0_11 = arith.constant 0 : index
    %12 = vector.load %arg5[%c0_10, %c0_11] : memref<1x16xf32, #tpu.memory_space<vmem>>, vector<1x16xf32>
    %13 = vector.broadcast %12 : vector<1x16xf32> to vector<2x16xf32>
    %14 = arith.addf %11, %13 : vector<2x16xf32>
    %15 = vector.extract_strided_slice %14 {offsets = [0, 0], sizes = [2, 8], strides = [1, 1]} : vector<2x16xf32> to vector<2x8xf32>
    %16 = vector.extract_strided_slice %14 {offsets = [0, 8], sizes = [2, 8], strides = [1, 1]} : vector<2x16xf32> to vector<2x8xf32>
    %cst_12 = arith.constant 2.000000e+01 : f32
    %17 = vector.broadcast %cst_12 : f32 to vector<2x8xf32>
    %18 = arith.minimumf %16, %17 : vector<2x8xf32>
    %cst_13 = arith.constant 2.000000e+01 : f32
    %19 = vector.broadcast %cst_13 : f32 to vector<2x8xf32>
    %20 = arith.cmpf ogt, %16, %19 : vector<2x8xf32>
    %21 = math.exp %18 : vector<2x8xf32>
    %22 = math.log1p %21 : vector<2x8xf32>
    %23 = arith.select %20, %16, %22 : vector<2x8xi1>, vector<2x8xf32>
    %cst_14 = arith.constant 1.000000e+00 : f32
    %24 = vector.broadcast %cst_14 : f32 to vector<2x8xf32>
    %25 = arith.mulf %24, %23 : vector<2x8xf32>
    %cst_15 = arith.constant 0.000000e+00 : f32
    %26 = vector.broadcast %cst_15 : f32 to vector<4x1024xf32>
    %c0_16 = arith.constant 0 : index
    %c4 = arith.constant 4 : index
    %c0_17 = arith.constant 0 : index
    %27 = vector.load %arg11[%c0_16, %c4, %c0_17] : memref<1x8x1024xf32, #tpu.memory_space<vmem>>, vector<1x4x1024xf32>
    %28 = vector.shape_cast %27 : vector<1x4x1024xf32> to vector<4x1024xf32>
    %29 = vector.shape_cast %26 : vector<4x1024xf32> to vector<1x4x1024xf32>
    tpu.vector_store %arg11[%c0_16, %c4, %c0_17], %29 {strides = array<i32>} : memref<1x8x1024xf32, #tpu.memory_space<vmem>>, vector<1x4x1024xf32>,
    %c0_18 = arith.constant 0 : index
    %c4_19 = arith.constant 4 : index
    %c8 = arith.constant 8 : index
    %30 = vector.load %arg11[%c0_18, %c4_19, %c8] : memref<1x8x1024xf32, #tpu.memory_space<vmem>>, vector<1x2x8xf32>
    %31 = vector.shape_cast %30 : vector<1x2x8xf32> to vector<2x8xf32>
    %32 = vector.shape_cast %15 : vector<2x8xf32> to vector<1x2x8xf32>
    tpu.vector_store %arg11[%c0_18, %c4_19, %c8], %32 {strides = array<i32>} : memref<1x8x1024xf32, #tpu.memory_space<vmem>>, vector<1x2x8xf32>,
    %c0_20 = arith.constant 0 : index
    %c4_21 = arith.constant 4 : index
    %c16 = arith.constant 16 : index
    %33 = vector.load %arg11[%c0_20, %c4_21, %c16] : memref<1x8x1024xf32, #tpu.memory_space<vmem>>, vector<1x2x8xf32>
    %34 = vector.shape_cast %33 : vector<1x2x8xf32> to vector<2x8xf32>
    %35 = vector.shape_cast %25 : vector<2x8xf32> to vector<1x2x8xf32>
    tpu.vector_store %arg11[%c0_20, %c4_21, %c16], %35 {strides = array<i32>} : memref<1x8x1024xf32, #tpu.memory_space<vmem>>, vector<1x2x8xf32>,
    %c0_22 = arith.constant 0 : index
    %c0_23 = arith.constant 0 : index
    %c0_24 = arith.constant 0 : index
    %36 = vector.load %arg10[%c0_22, %c0_23, %c0_24] : memref<1x4x8xf32, #tpu.memory_space<vmem>>, vector<1x2x8xf32>
    %37 = vector.shape_cast %36 : vector<1x2x8xf32> to vector<2x8xf32>
    %38 = arith.mulf %25, %37 : vector<2x8xf32>
    %39 = arith.addf %15, %38 : vector<2x8xf32>
    %c0_25 = arith.constant 0 : index
    %c4_26 = arith.constant 4 : index
    %c0_27 = arith.constant 0 : index
    %40 = vector.load %arg11[%c0_25, %c4_26, %c0_27] : memref<1x8x1024xf32, #tpu.memory_space<vmem>>, vector<1x2x8xf32>
    %41 = vector.shape_cast %40 : vector<1x2x8xf32> to vector<2x8xf32>
    %42 = vector.shape_cast %39 : vector<2x8xf32> to vector<1x2x8xf32>
    tpu.vector_store %arg11[%c0_25, %c4_26, %c0_27], %42 {strides = array<i32>} : memref<1x8x1024xf32, #tpu.memory_space<vmem>>, vector<1x2x8xf32>,
    %c0_28 = arith.constant 0 : index
    %c0_29 = arith.constant 0 : index
    %43 = vector.load %arg6[%c0_28, %c0_29] : memref<8x32xf32, #tpu.memory_space<vmem>>, vector<8x32xf32>
    %cst_30 = arith.constant dense<0.000000e+00> : vector<2x32xf32>
    %44 = tpu.matmul %39, %43, %cst_30 {dimension_numbers = #tpu.dot_dimension_numbers<[1], [0], [0], [1], [0, 0, 1, 1], [], []>} : vector<2x8xf32>, vector<8x32xf32>, vector<2x32xf32> -> vector<2x32xf32>
    %c0_31 = arith.constant 0 : index
    %c0_32 = arith.constant 0 : index
    %45 = vector.load %arg7[%c0_31, %c0_32] : memref<1x32xf32, #tpu.memory_space<vmem>>, vector<1x32xf32>
    %46 = vector.broadcast %45 : vector<1x32xf32> to vector<2x32xf32>
    %47 = arith.addf %44, %46 : vector<2x32xf32>
    %cst_33 = arith.constant 0.000000e+00 : f32
    %48 = vector.broadcast %cst_33 : f32 to vector<2x32xf32>
    %49 = arith.maximumf %47, %48 : vector<2x32xf32>
    %50 = arith.truncf %49 : vector<2x32xf32> to vector<2x32xbf16>
    %c0_34 = arith.constant 0 : index
    %c0_35 = arith.constant 0 : index
    %51 = vector.load %arg8[%c0_34, %c0_35] : memref<32x1024xbf16, #tpu.memory_space<vmem>>, vector<32x1024xbf16>
    %cst_36 = arith.constant dense<0.000000e+00> : vector<2x1024xf32>
    %52 = tpu.matmul %50, %51, %cst_36 {dimension_numbers = #tpu.dot_dimension_numbers<[1], [0], [0], [1], [0, 0, 1, 1], [], []>} : vector<2x32xbf16>, vector<32x1024xbf16>, vector<2x1024xf32> -> vector<2x1024xf32>
    %c0_37 = arith.constant 0 : index
    %c0_38 = arith.constant 0 : index
    %53 = vector.load %arg9[%c0_37, %c0_38] : memref<1x1024xf32, #tpu.memory_space<vmem>>, vector<1x1024xf32>
    %54 = vector.broadcast %53 : vector<1x1024xf32> to vector<2x1024xf32>
    %55 = arith.addf %52, %54 : vector<2x1024xf32>
    %c0_39 = arith.constant 0 : index
    %c0_40 = arith.constant 0 : index
    %c0_41 = arith.constant 0 : index
    %56 = vector.load %arg11[%c0_39, %c0_40, %c0_41] : memref<1x8x1024xf32, #tpu.memory_space<vmem>>, vector<1x2x1024xf32>
    %57 = vector.shape_cast %56 : vector<1x2x1024xf32> to vector<2x1024xf32>
    %58 = vector.shape_cast %55 : vector<2x1024xf32> to vector<1x2x1024xf32>
    tpu.vector_store %arg11[%c0_39, %c0_40, %c0_41], %58 {strides = array<i32>} : memref<1x8x1024xf32, #tpu.memory_space<vmem>>, vector<1x2x1024xf32>,
    %c0_42 = arith.constant 0 : index
    %c2 = arith.constant 2 : index
    %c0_43 = arith.constant 0 : index
    %59 = vector.load %arg10[%c0_42, %c2, %c0_43] : memref<1x4x8xf32, #tpu.memory_space<vmem>>, vector<1x2x8xf32>
    %60 = vector.shape_cast %59 : vector<1x2x8xf32> to vector<2x8xf32>
    %61 = arith.mulf %25, %60 : vector<2x8xf32>
    %62 = arith.addf %15, %61 : vector<2x8xf32>
    %c0_44 = arith.constant 0 : index
    %c6 = arith.constant 6 : index
    %c0_45 = arith.constant 0 : index
    %63 = vector.load %arg11[%c0_44, %c6, %c0_45] : memref<1x8x1024xf32, #tpu.memory_space<vmem>>, vector<1x2x8xf32>
    %64 = vector.shape_cast %63 : vector<1x2x8xf32> to vector<2x8xf32>
    %65 = vector.shape_cast %62 : vector<2x8xf32> to vector<1x2x8xf32>
    tpu.vector_store %arg11[%c0_44, %c6, %c0_45], %65 {strides = array<i32>} : memref<1x8x1024xf32, #tpu.memory_space<vmem>>, vector<1x2x8xf32>,
    %c0_46 = arith.constant 0 : index
    %c0_47 = arith.constant 0 : index
    %66 = vector.load %arg6[%c0_46, %c0_47] : memref<8x32xf32, #tpu.memory_space<vmem>>, vector<8x32xf32>
    %cst_48 = arith.constant dense<0.000000e+00> : vector<2x32xf32>
    %67 = tpu.matmul %62, %66, %cst_48 {dimension_numbers = #tpu.dot_dimension_numbers<[1], [0], [0], [1], [0, 0, 1, 1], [], []>} : vector<2x8xf32>, vector<8x32xf32>, vector<2x32xf32> -> vector<2x32xf32>
    %c0_49 = arith.constant 0 : index
    %c0_50 = arith.constant 0 : index
    %68 = vector.load %arg7[%c0_49, %c0_50] : memref<1x32xf32, #tpu.memory_space<vmem>>, vector<1x32xf32>
    %69 = vector.broadcast %68 : vector<1x32xf32> to vector<2x32xf32>
    %70 = arith.addf %67, %69 : vector<2x32xf32>
    %cst_51 = arith.constant 0.000000e+00 : f32
    %71 = vector.broadcast %cst_51 : f32 to vector<2x32xf32>
    %72 = arith.maximumf %70, %71 : vector<2x32xf32>
    %73 = arith.truncf %72 : vector<2x32xf32> to vector<2x32xbf16>
    %c0_52 = arith.constant 0 : index
    %c0_53 = arith.constant 0 : index
    %74 = vector.load %arg8[%c0_52, %c0_53] : memref<32x1024xbf16, #tpu.memory_space<vmem>>, vector<32x1024xbf16>
    %cst_54 = arith.constant dense<0.000000e+00> : vector<2x1024xf32>
    %75 = tpu.matmul %73, %74, %cst_54 {dimension_numbers = #tpu.dot_dimension_numbers<[1], [0], [0], [1], [0, 0, 1, 1], [], []>} : vector<2x32xbf16>, vector<32x1024xbf16>, vector<2x1024xf32> -> vector<2x1024xf32>
    %c0_55 = arith.constant 0 : index
    %c0_56 = arith.constant 0 : index
    %76 = vector.load %arg9[%c0_55, %c0_56] : memref<1x1024xf32, #tpu.memory_space<vmem>>, vector<1x1024xf32>
    %77 = vector.broadcast %76 : vector<1x1024xf32> to vector<2x1024xf32>
    %78 = arith.addf %75, %77 : vector<2x1024xf32>
    %c0_57 = arith.constant 0 : index
    %c2_58 = arith.constant 2 : index
    %c0_59 = arith.constant 0 : index
    %79 = vector.load %arg11[%c0_57, %c2_58, %c0_59] : memref<1x8x1024xf32, #tpu.memory_space<vmem>>, vector<1x2x1024xf32>
    %80 = vector.shape_cast %79 : vector<1x2x1024xf32> to vector<2x1024xf32>
    %81 = vector.shape_cast %78 : vector<2x1024xf32> to vector<1x2x1024xf32>
    tpu.vector_store %arg11[%c0_57, %c2_58, %c0_59], %81 {strides = array<i32>} : memref<1x8x1024xf32, #tpu.memory_space<vmem>>, vector<1x2x1024xf32>,
    return
  }
  func.func @transform_0(%arg0: i32) -> (i32, i32, i32) {
    %c0_i32 = arith.constant 0 : i32
    %c0_i32_0 = arith.constant 0 : i32
    %c0_i32_1 = arith.constant 0 : i32
    return %arg0, %c0_i32, %c0_i32_0 : i32, i32, i32
  }
  func.func @transform_1(%arg0: i32) -> (i32, i32) {
    %c0_i32 = arith.constant 0 : i32
    %c0_i32_0 = arith.constant 0 : i32
    %c0_i32_1 = arith.constant 0 : i32
    return %c0_i32, %c0_i32_0 : i32, i32
  }
  func.func @transform_2(%arg0: i32) -> (i32, i32) {
    %c0_i32 = arith.constant 0 : i32
    %c0_i32_0 = arith.constant 0 : i32
    %c0_i32_1 = arith.constant 0 : i32
    return %c0_i32, %c0_i32_0 : i32, i32
  }
  func.func @transform_3(%arg0: i32) -> (i32, i32) {
    %c0_i32 = arith.constant 0 : i32
    %c0_i32_0 = arith.constant 0 : i32
    %c0_i32_1 = arith.constant 0 : i32
    return %c0_i32, %c0_i32_0 : i32, i32
  }
  func.func @transform_4(%arg0: i32) -> (i32, i32) {
    %c0_i32 = arith.constant 0 : i32
    %c0_i32_0 = arith.constant 0 : i32
    %c0_i32_1 = arith.constant 0 : i32
    return %c0_i32, %c0_i32_0 : i32, i32
  }
  func.func @transform_5(%arg0: i32) -> (i32, i32) {
    %c0_i32 = arith.constant 0 : i32
    %c0_i32_0 = arith.constant 0 : i32
    %c0_i32_1 = arith.constant 0 : i32
    return %c0_i32, %c0_i32_0 : i32, i32
  }
  func.func @transform_6(%arg0: i32) -> (i32, i32) {
    %c0_i32 = arith.constant 0 : i32
    %c0_i32_0 = arith.constant 0 : i32
    %c0_i32_1 = arith.constant 0 : i32
    return %c0_i32, %c0_i32_0 : i32, i32
  }
  func.func @transform_7(%arg0: i32) -> (i32, i32) {
    %c0_i32 = arith.constant 0 : i32
    %c0_i32_0 = arith.constant 0 : i32
    %c0_i32_1 = arith.constant 0 : i32
    return %c0_i32, %c0_i32_0 : i32, i32
  }
  func.func @transform_8(%arg0: i32) -> (i32, i32) {
    %c0_i32 = arith.constant 0 : i32
    %c0_i32_0 = arith.constant 0 : i32
    %c0_i32_1 = arith.constant 0 : i32
    return %c0_i32, %c0_i32_0 : i32, i32
  }
  func.func @transform_9(%arg0: i32) -> (i32, i32, i32) {
    %c0_i32 = arith.constant 0 : i32
    %c0_i32_0 = arith.constant 0 : i32
    %c0_i32_1 = arith.constant 0 : i32
    return %arg0, %c0_i32, %c0_i32_0 : i32, i32, i32
  }
  func.func @transform_10(%arg0: i32) -> (i32, i32, i32) {
    %c0_i32 = arith.constant 0 : i32
    %c0_i32_0 = arith.constant 0 : i32
    %c0_i32_1 = arith.constant 0 : i32
    return %arg0, %c0_i32, %c0_i32_0 : i32, i32, i32
  }
}

</mosaic_0001>

<llo_original>
// kernel: hvae_forward.1
$region0: #{hvae_forward.1}
  #allocation0 [shape = 'u32[]', space=smem, size = 0x4, offset = 0x4, fixed_abs, tag = 'smem constant byte address 0x4 - core index']
  #allocation1 [shape = 'u32[144,128]{1,0:T(1,128)}', space=vmem, size = 0x12000, scoped, tag = 'internal scratch']
  %s0 = inlined_call_operand.vmem [shape: f32[1,2,1024], index: 0, kind: input, shape index: {}]
  %s1 = inlined_call_operand.vmem [shape: bf16[1024,32], index: 1, kind: input, shape index: {}]
  %s2 = inlined_call_operand.vmem [shape: f32[1,32], index: 2, kind: input, shape index: {}]
  %s3 = inlined_call_operand.vmem [shape: f32[32,16], index: 3, kind: input, shape index: {}]
  %s4 = inlined_call_operand.vmem [shape: f32[1,16], index: 4, kind: input, shape index: {}]
  %s5 = inlined_call_operand.vmem [shape: f32[8,32], index: 5, kind: input, shape index: {}]
  %s6 = inlined_call_operand.vmem [shape: f32[1,32], index: 6, kind: input, shape index: {}]
  %s7 = inlined_call_operand.vmem [shape: bf16[32,1024], index: 7, kind: input, shape index: {}]
  %s8 = inlined_call_operand.vmem [shape: f32[1,1024], index: 8, kind: input, shape index: {}]
  %s9 = inlined_call_operand.vmem [shape: f32[1,4,8], index: 9, kind: input, shape index: {}]
  %s10 = inlined_call_operand.vmem [shape: f32[1,8,1024], index: 10, kind: output, shape index: {}]
  %s11 = sld [smem:[#allocation0]]
  $region50: #{hvae_forward.1} parent=0
    _
  %s13 = ssub.s32 1, %s11
  %s14 = scalar_select 0, %s13, %s11
  // Predicated region
  $region2: #{hvae_forward.1} parent=0 // pred_check
    _
  $region3: #{hvae_forward.1} parent=0 // pred_check_branch
    %16 = sbr.rel (0) target = $region5
  $region4: #{hvae_forward.1} parent=0 // pred_region
    _
  $region5: #{hvae_forward.1} parent=0 // pred_fallthru
    _
  // Predicated region
  $region6: #{hvae_forward.1} parent=0 // pred_check
    _
  $region7: #{hvae_forward.1} parent=0 // pred_check_branch
    %18 = sbr.rel (0) target = $region9
  $region8: #{hvae_forward.1} parent=0 // pred_region
    _
  $region9: #{hvae_forward.1} parent=0 // pred_fallthru
    _
  // Predicated region
  $region10: #{hvae_forward.1} parent=0 // pred_check
    _
  $region11: #{hvae_forward.1} parent=0 // pred_check_branch
    %20 = sbr.rel (0) target = $region13
  $region12: #{hvae_forward.1} parent=0 // pred_region
    _
  $region13: #{hvae_forward.1} parent=0 // pred_fallthru
    _
  // Predicated region
  $region14: #{hvae_forward.1} parent=0 // pred_check
    _
  $region15: #{hvae_forward.1} parent=0 // pred_check_branch
    %22 = sbr.rel (0) target = $region17
  $region16: #{hvae_forward.1} parent=0 // pred_region
    _
  $region17: #{hvae_forward.1} parent=0 // pred_fallthru
    _
  // Predicated region
  $region18: #{hvae_forward.1} parent=0 // pred_check
    _
  $region19: #{hvae_forward.1} parent=0 // pred_check_branch
    %24 = sbr.rel (0) target = $region21
  $region20: #{hvae_forward.1} parent=0 // pred_region
    _
  $region21: #{hvae_forward.1} parent=0 // pred_fallthru
    _
  // Predicated region
  $region22: #{hvae_forward.1} parent=0 // pred_check
    _
  $region23: #{hvae_forward.1} parent=0 // pred_check_branch
    %26 = sbr.rel (0) target = $region25
  $region24: #{hvae_forward.1} parent=0 // pred_region
    _
  $region25: #{hvae_forward.1} parent=0 // pred_fallthru
    _
  // Predicated region
  $region26: #{hvae_forward.1} parent=0 // pred_check
    _
  $region27: #{hvae_forward.1} parent=0 // pred_check_branch
    %28 = sbr.rel (0) target = $region29
  $region28: #{hvae_forward.1} parent=0 // pred_region
    _
  $region29: #{hvae_forward.1} parent=0 // pred_fallthru
    _
  // Predicated region
  $region30: #{hvae_forward.1} parent=0 // pred_check
    _
  $region31: #{hvae_forward.1} parent=0 // pred_check_branch
    %30 = sbr.rel (0) target = $region33
  $region32: #{hvae_forward.1} parent=0 // pred_region
    _
  $region33: #{hvae_forward.1} parent=0 // pred_fallthru
    _
  // Predicated region
  $region34: #{hvae_forward.1} parent=0 // pred_check
    _
  $region35: #{hvae_forward.1} parent=0 // pred_check_branch
    %32 = sbr.rel (0) target = $region37
  $region36: #{hvae_forward.1} parent=0 // pred_region
    _
  $region37: #{hvae_forward.1} parent=0 // pred_fallthru
    _
  // Predicated region
  $region38: #{hvae_forward.1} parent=0 // pred_check
    _
  $region39: #{hvae_forward.1} parent=0 // pred_check_branch
    %34 = sbr.rel (0) target = $region41
  $region40: #{hvae_forward.1} parent=0 // pred_region
    _
  $region41: #{hvae_forward.1} parent=0 // pred_fallthru
    _
  %v36 = vld [vmem:[%s0] sm:$0xff]
  %v37 = vld [vmem:[%s0 + $0x8] sm:$0xff]
  %v40 = vcombine.high %v36, %v36
  %v42 = vunpack.c.l.s4 1983009808
  %v43 = vunpack.c.0.s8 %v42
  %v44 = vlaneseq
  %v45 = vshrl.u32 %v44, 7
  %v46 = vsub.s32 %v43, %v45
  %v47 = vrot.slane %v36, %v46
  %v49 = vunpack.c.l.s4 1983009808
  %v50 = vunpack.c.0.s8 %v49
  %v51 = vlaneseq
  %v52 = vshrl.u32 %v51, 7
  %v53 = vsub.s32 %v50, %v52
  %v54 = vrot.slane %v40, %v53
  %v55 = vcombine.high %v47, %v47
  %v56 = vcombine.high %v54, %v54
  %v57 = vcombine.high %v37, %v37
  %v59 = vunpack.c.l.s4 1983009808
  %v60 = vunpack.c.0.s8 %v59
  %v61 = vlaneseq
  %v62 = vshrl.u32 %v61, 7
  %v63 = vsub.s32 %v60, %v62
  %v64 = vrot.slane %v37, %v63
  %v66 = vunpack.c.l.s4 1983009808
  %v67 = vunpack.c.0.s8 %v66
  %v68 = vlaneseq
  %v69 = vshrl.u32 %v68, 7
  %v70 = vsub.s32 %v67, %v69
  %v71 = vrot.slane %v57, %v70
  %v72 = vcombine.high %v64, %v64
  %v73 = vcombine.high %v71, %v71
  %v82 = vpack.c.bf16 %v47, %v47
  %v83 = vpack.c.bf16 %v55, %v55
  %v84 = vpack.c.bf16 %v54, %v54
  %v85 = vpack.c.bf16 %v56, %v56
  %v86 = vpack.c.bf16 %v64, %v64
  %v87 = vpack.c.bf16 %v72, %v72
  %v88 = vpack.c.bf16 %v71, %v71
  %v89 = vpack.c.bf16 %v73, %v73
  %v90 = vld [vmem:[%s1] sm:$0xf]
  %v91 = vld [vmem:[%s1 + $0x4] sm:$0xf]
  %v92 = vld [vmem:[%s1 + $0x8] sm:$0xf]
  %v93 = vld [vmem:[%s1 + $0xc] sm:$0xf]
  %v94 = vld [vmem:[%s1 + $0x10] sm:$0xf]
  %v95 = vld [vmem:[%s1 + $0x14] sm:$0xf]
  %v96 = vld [vmem:[%s1 + $0x18] sm:$0xf]
  %v97 = vld [vmem:[%s1 + $0x1c] sm:$0xf]
  %v98 = vld [vmem:[%s1 + $0x20] sm:$0xf]
  %v99 = vld [vmem:[%s1 + $0x24] sm:$0xf]
  %v100 = vld [vmem:[%s1 + $0x28] sm:$0xf]
  %v101 = vld [vmem:[%s1 + $0x2c] sm:$0xf]
  %v102 = vld [vmem:[%s1 + $0x30] sm:$0xf]
  %v103 = vld [vmem:[%s1 + $0x34] sm:$0xf]
  %v104 = vld [vmem:[%s1 + $0x38] sm:$0xf]
  %v105 = vld [vmem:[%s1 + $0x3c] sm:$0xf]
  %v106 = vld [vmem:[%s1 + $0x40] sm:$0xf]
  %v107 = vld [vmem:[%s1 + $0x44] sm:$0xf]
  %v108 = vld [vmem:[%s1 + $0x48] sm:$0xf]
  %v109 = vld [vmem:[%s1 + $0x4c] sm:$0xf]
  %v110 = vld [vmem:[%s1 + $0x50] sm:$0xf]
  %v111 = vld [vmem:[%s1 + $0x54] sm:$0xf]
  %v112 = vld [vmem:[%s1 + $0x58] sm:$0xf]
  %v113 = vld [vmem:[%s1 + $0x5c] sm:$0xf]
  %v114 = vld [vmem:[%s1 + $0x60] sm:$0xf]
  %v115 = vld [vmem:[%s1 + $0x64] sm:$0xf]
  %v116 = vld [vmem:[%s1 + $0x68] sm:$0xf]
  %v117 = vld [vmem:[%s1 + $0x6c] sm:$0xf]
  %v118 = vld [vmem:[%s1 + $0x70] sm:$0xf]
  %v119 = vld [vmem:[%s1 + $0x74] sm:$0xf]
  %v120 = vld [vmem:[%s1 + $0x78] sm:$0xf]
  %v121 = vld [vmem:[%s1 + $0x7c] sm:$0xf]
  %v122 = vld [vmem:[%s1 + $0x80] sm:$0xf]
  %v123 = vld [vmem:[%s1 + $0x84] sm:$0xf]
  %v124 = vld [vmem:[%s1 + $0x88] sm:$0xf]
  %v125 = vld [vmem:[%s1 + $0x8c] sm:$0xf]
  %v126 = vld [vmem:[%s1 + $0x90] sm:$0xf]
  %v127 = vld [vmem:[%s1 + $0x94] sm:$0xf]
  %v128 = vld [vmem:[%s1 + $0x98] sm:$0xf]
  %v129 = vld [vmem:[%s1 + $0x9c] sm:$0xf]
  %v130 = vld [vmem:[%s1 + $0xa0] sm:$0xf]
  %v131 = vld [vmem:[%s1 + $0xa4] sm:$0xf]
  %v132 = vld [vmem:[%s1 + $0xa8] sm:$0xf]
  %v133 = vld [vmem:[%s1 + $0xac] sm:$0xf]
  %v134 = vld [vmem:[%s1 + $0xb0] sm:$0xf]
  %v135 = vld [vmem:[%s1 + $0xb4] sm:$0xf]
  %v136 = vld [vmem:[%s1 + $0xb8] sm:$0xf]
  %v137 = vld [vmem:[%s1 + $0xbc] sm:$0xf]
  %v138 = vld [vmem:[%s1 + $0xc0] sm:$0xf]
  %v139 = vld [vmem:[%s1 + $0xc4] sm:$0xf]
  %v140 = vld [vmem:[%s1 + $0xc8] sm:$0xf]
  %v141 = vld [vmem:[%s1 + $0xcc] sm:$0xf]
  %v142 = vld [vmem:[%s1 + $0xd0] sm:$0xf]
  %v143 = vld [vmem:[%s1 + $0xd4] sm:$0xf]
  %v144 = vld [vmem:[%s1 + $0xd8] sm:$0xf]
  %v145 = vld [vmem:[%s1 + $0xdc] sm:$0xf]
  %v146 = vld [vmem:[%s1 + $0xe0] sm:$0xf]
  %v147 = vld [vmem:[%s1 + $0xe4] sm:$0xf]
  %v148 = vld [vmem:[%s1 + $0xe8] sm:$0xf]
  %v149 = vld [vmem:[%s1 + $0xec] sm:$0xf]
  %v150 = vld [vmem:[%s1 + $0xf0] sm:$0xf]
  %v151 = vld [vmem:[%s1 + $0xf4] sm:$0xf]
  %v152 = vld [vmem:[%s1 + $0xf8] sm:$0xf]
  %v153 = vld [vmem:[%s1 + $0xfc] sm:$0xf]
  %v154 = vld [vmem:[%s1 + $0x100] sm:$0xf]
  %v155 = vld [vmem:[%s1 + $0x104] sm:$0xf]
  %v156 = vld [vmem:[%s1 + $0x108] sm:$0xf]
  %v157 = vld [vmem:[%s1 + $0x10c] sm:$0xf]
  %v158 = vld [vmem:[%s1 + $0x110] sm:$0xf]
  %v159 = vld [vmem:[%s1 + $0x114] sm:$0xf]
  %v160 = vld [vmem:[%s1 + $0x118] sm:$0xf]
  %v161 = vld [vmem:[%s1 + $0x11c] sm:$0xf]
  %v162 = vld [vmem:[%s1 + $0x120] sm:$0xf]
  %v163 = vld [vmem:[%s1 + $0x124] sm:$0xf]
  %v164 = vld [vmem:[%s1 + $0x128] sm:$0xf]
  %v165 = vld [vmem:[%s1 + $0x12c] sm:$0xf]
  %v166 = vld [vmem:[%s1 + $0x130] sm:$0xf]
  %v167 = vld [vmem:[%s1 + $0x134] sm:$0xf]
  %v168 = vld [vmem:[%s1 + $0x138] sm:$0xf]
  %v169 = vld [vmem:[%s1 + $0x13c] sm:$0xf]
  %v170 = vld [vmem:[%s1 + $0x140] sm:$0xf]
  %v171 = vld [vmem:[%s1 + $0x144] sm:$0xf]
  %v172 = vld [vmem:[%s1 + $0x148] sm:$0xf]
  %v173 = vld [vmem:[%s1 + $0x14c] sm:$0xf]
  %v174 = vld [vmem:[%s1 + $0x150] sm:$0xf]
  %v175 = vld [vmem:[%s1 + $0x154] sm:$0xf]
  %v176 = vld [vmem:[%s1 + $0x158] sm:$0xf]
  %v177 = vld [vmem:[%s1 + $0x15c] sm:$0xf]
  %v178 = vld [vmem:[%s1 + $0x160] sm:$0xf]
  %v179 = vld [vmem:[%s1 + $0x164] sm:$0xf]
  %v180 = vld [vmem:[%s1 + $0x168] sm:$0xf]
  %v181 = vld [vmem:[%s1 + $0x16c] sm:$0xf]
  %v182 = vld [vmem:[%s1 + $0x170] sm:$0xf]
  %v183 = vld [vmem:[%s1 + $0x174] sm:$0xf]
  %v184 = vld [vmem:[%s1 + $0x178] sm:$0xf]
  %v185 = vld [vmem:[%s1 + $0x17c] sm:$0xf]
  %v186 = vld [vmem:[%s1 + $0x180] sm:$0xf]
  %v187 = vld [vmem:[%s1 + $0x184] sm:$0xf]
  %v188 = vld [vmem:[%s1 + $0x188] sm:$0xf]
  %v189 = vld [vmem:[%s1 + $0x18c] sm:$0xf]
  %v190 = vld [vmem:[%s1 + $0x190] sm:$0xf]
  %v191 = vld [vmem:[%s1 + $0x194] sm:$0xf]
  %v192 = vld [vmem:[%s1 + $0x198] sm:$0xf]
  %v193 = vld [vmem:[%s1 + $0x19c] sm:$0xf]
  %v194 = vld [vmem:[%s1 + $0x1a0] sm:$0xf]
  %v195 = vld [vmem:[%s1 + $0x1a4] sm:$0xf]
  %v196 = vld [vmem:[%s1 + $0x1a8] sm:$0xf]
  %v197 = vld [vmem:[%s1 + $0x1ac] sm:$0xf]
  %v198 = vld [vmem:[%s1 + $0x1b0] sm:$0xf]
  %v199 = vld [vmem:[%s1 + $0x1b4] sm:$0xf]
  %v200 = vld [vmem:[%s1 + $0x1b8] sm:$0xf]
  %v201 = vld [vmem:[%s1 + $0x1bc] sm:$0xf]
  %v202 = vld [vmem:[%s1 + $0x1c0] sm:$0xf]
  %v203 = vld [vmem:[%s1 + $0x1c4] sm:$0xf]
  %v204 = vld [vmem:[%s1 + $0x1c8] sm:$0xf]
  %v205 = vld [vmem:[%s1 + $0x1cc] sm:$0xf]
  %v206 = vld [vmem:[%s1 + $0x1d0] sm:$0xf]
  %v207 = vld [vmem:[%s1 + $0x1d4] sm:$0xf]
  %v208 = vld [vmem:[%s1 + $0x1d8] sm:$0xf]
  %v209 = vld [vmem:[%s1 + $0x1dc] sm:$0xf]
  %v210 = vld [vmem:[%s1 + $0x1e0] sm:$0xf]
  %v211 = vld [vmem:[%s1 + $0x1e4] sm:$0xf]
  %v212 = vld [vmem:[%s1 + $0x1e8] sm:$0xf]
  %v213 = vld [vmem:[%s1 + $0x1ec] sm:$0xf]
  %v214 = vld [vmem:[%s1 + $0x1f0] sm:$0xf]
  %v215 = vld [vmem:[%s1 + $0x1f4] sm:$0xf]
  %v216 = vld [vmem:[%s1 + $0x1f8] sm:$0xf]
  %v217 = vld [vmem:[%s1 + $0x1fc] sm:$0xf]
  %v218 = vld [vmem:[%s2] sm:$0x1]
  %v220 = vlaneseq
  %v221 = vshrl.u32 %v220, 7
  %v222 = vsub.s32 0, %v221
  %v223 = vrot.slane %v218, %v222
  %v353 = vunpack.c.l.b16 %v90
  %v354 = vunpack.c.l.b16 %v91
  %v355 = vunpack.c.l.b16 %v92
  %v356 = vunpack.c.l.b16 %v93
  %v357 = vunpack.c.l.b16 %v94
  %v358 = vunpack.c.l.b16 %v95
  %v359 = vunpack.c.l.b16 %v96
  %v360 = vunpack.c.l.b16 %v97
  %v361 = vunpack.c.l.b16 %v98
  %v362 = vunpack.c.l.b16 %v99
  %v363 = vunpack.c.l.b16 %v100
  %v364 = vunpack.c.l.b16 %v101
  %v365 = vunpack.c.l.b16 %v102
  %v366 = vunpack.c.l.b16 %v103
  %v367 = vunpack.c.l.b16 %v104
  %v368 = vunpack.c.l.b16 %v105
  %v369 = vunpack.c.l.b16 %v106
  %v370 = vunpack.c.l.b16 %v107
  %v371 = vunpack.c.l.b16 %v108
  %v372 = vunpack.c.l.b16 %v109
  %v373 = vunpack.c.l.b16 %v110
  %v374 = vunpack.c.l.b16 %v111
  %v375 = vunpack.c.l.b16 %v112
  %v376 = vunpack.c.l.b16 %v113
  %v377 = vunpack.c.l.b16 %v114
  %v378 = vunpack.c.l.b16 %v115
  %v379 = vunpack.c.l.b16 %v116
  %v380 = vunpack.c.l.b16 %v117
  %v381 = vunpack.c.l.b16 %v118
  %v382 = vunpack.c.l.b16 %v119
  %v383 = vunpack.c.l.b16 %v120
  %v384 = vunpack.c.l.b16 %v121
  %v385 = vunpack.c.l.b16 %v122
  %v386 = vunpack.c.l.b16 %v123
  %v387 = vunpack.c.l.b16 %v124
  %v388 = vunpack.c.l.b16 %v125
  %v389 = vunpack.c.l.b16 %v126
  %v390 = vunpack.c.l.b16 %v127
  %v391 = vunpack.c.l.b16 %v128
  %v392 = vunpack.c.l.b16 %v129
  %v393 = vunpack.c.l.b16 %v130
  %v394 = vunpack.c.l.b16 %v131
  %v395 = vunpack.c.l.b16 %v132
  %v396 = vunpack.c.l.b16 %v133
  %v397 = vunpack.c.l.b16 %v134
  %v398 = vunpack.c.l.b16 %v135
  %v399 = vunpack.c.l.b16 %v136
  %v400 = vunpack.c.l.b16 %v137
  %v401 = vunpack.c.l.b16 %v138
  %v402 = vunpack.c.l.b16 %v139
  %v403 = vunpack.c.l.b16 %v140
  %v404 = vunpack.c.l.b16 %v141
  %v405 = vunpack.c.l.b16 %v142
  %v406 = vunpack.c.l.b16 %v143
  %v407 = vunpack.c.l.b16 %v144
  %v408 = vunpack.c.l.b16 %v145
  %v409 = vunpack.c.l.b16 %v146
  %v410 = vunpack.c.l.b16 %v147
  %v411 = vunpack.c.l.b16 %v148
  %v412 = vunpack.c.l.b16 %v149
  %v413 = vunpack.c.l.b16 %v150
  %v414 = vunpack.c.l.b16 %v151
  %v415 = vunpack.c.l.b16 %v152
  %v416 = vunpack.c.l.b16 %v153
  %v417 = vunpack.c.l.b16 %v154
  %v418 = vunpack.c.l.b16 %v155
  %v419 = vunpack.c.l.b16 %v156
  %v420 = vunpack.c.l.b16 %v157
  %v421 = vunpack.c.l.b16 %v158
  %v422 = vunpack.c.l.b16 %v159
  %v423 = vunpack.c.l.b16 %v160
  %v424 = vunpack.c.l.b16 %v161
  %v425 = vunpack.c.l.b16 %v162
  %v426 = vunpack.c.l.b16 %v163
  %v427 = vunpack.c.l.b16 %v164
  %v428 = vunpack.c.l.b16 %v165
  %v429 = vunpack.c.l.b16 %v166
  %v430 = vunpack.c.l.b16 %v167
  %v431 = vunpack.c.l.b16 %v168
  %v432 = vunpack.c.l.b16 %v169
  %v433 = vunpack.c.l.b16 %v170
  %v434 = vunpack.c.l.b16 %v171
  %v435 = vunpack.c.l.b16 %v172
  %v436 = vunpack.c.l.b16 %v173
  %v437 = vunpack.c.l.b16 %v174
  %v438 = vunpack.c.l.b16 %v175
  %v439 = vunpack.c.l.b16 %v176
  %v440 = vunpack.c.l.b16 %v177
  %v441 = vunpack.c.l.b16 %v178
  %v442 = vunpack.c.l.b16 %v179
  %v443 = vunpack.c.l.b16 %v180
  %v444 = vunpack.c.l.b16 %v181
  %v445 = vunpack.c.l.b16 %v182
  %v446 = vunpack.c.l.b16 %v183
  %v447 = vunpack.c.l.b16 %v184
  %v448 = vunpack.c.l.b16 %v185
  %v449 = vunpack.c.l.b16 %v186
  %v450 = vunpack.c.l.b16 %v187
  %v451 = vunpack.c.l.b16 %v188
  %v452 = vunpack.c.l.b16 %v189
  %v453 = vunpack.c.l.b16 %v190
  %v454 = vunpack.c.l.b16 %v191
  %v455 = vunpack.c.l.b16 %v192
  %v456 = vunpack.c.l.b16 %v193
  %v457 = vunpack.c.l.b16 %v194
  %v458 = vunpack.c.l.b16 %v195
  %v459 = vunpack.c.l.b16 %v196
  %v460 = vunpack.c.l.b16 %v197
  %v461 = vunpack.c.l.b16 %v198
  %v462 = vunpack.c.l.b16 %v199
  %v463 = vunpack.c.l.b16 %v200
  %v464 = vunpack.c.l.b16 %v201
  %v465 = vunpack.c.l.b16 %v202
  %v466 = vunpack.c.l.b16 %v203
  %v467 = vunpack.c.l.b16 %v204
  %v468 = vunpack.c.l.b16 %v205
  %v469 = vunpack.c.l.b16 %v206
  %v470 = vunpack.c.l.b16 %v207
  %v471 = vunpack.c.l.b16 %v208
  %v472 = vunpack.c.l.b16 %v209
  %v473 = vunpack.c.l.b16 %v210
  %v474 = vunpack.c.l.b16 %v211
  %v475 = vunpack.c.l.b16 %v212
  %v476 = vunpack.c.l.b16 %v213
  %v477 = vunpack.c.l.b16 %v214
  %v478 = vunpack.c.l.b16 %v215
  %v479 = vunpack.c.l.b16 %v216
  %v480 = vunpack.c.l.b16 %v217
  %v481 = vpack.c.b16 %v354, %v353
  %v482 = vpack.c.b16 %v356, %v355
  %v483 = vpack.c.b16 %v358, %v357
  %v484 = vpack.c.b16 %v360, %v359
  %v485 = vpack.c.b16 %v362, %v361
  %v486 = vpack.c.b16 %v364, %v363
  %v487 = vpack.c.b16 %v366, %v365
  %v488 = vpack.c.b16 %v368, %v367
  %v489 = vpack.c.b16 %v370, %v369
  %v490 = vpack.c.b16 %v372, %v371
  %v491 = vpack.c.b16 %v374, %v373
  %v492 = vpack.c.b16 %v376, %v375
  %v493 = vpack.c.b16 %v378, %v377
  %v494 = vpack.c.b16 %v380, %v379
  %v495 = vpack.c.b16 %v382, %v381
  %v496 = vpack.c.b16 %v384, %v383
  %v497 = vpack.c.b16 %v386, %v385
  %v498 = vpack.c.b16 %v388, %v387
  %v499 = vpack.c.b16 %v390, %v389
  %v500 = vpack.c.b16 %v392, %v391
  %v501 = vpack.c.b16 %v394, %v393
  %v502 = vpack.c.b16 %v396, %v395
  %v503 = vpack.c.b16 %v398, %v397
  %v504 = vpack.c.b16 %v400, %v399
  %v505 = vpack.c.b16 %v402, %v401
  %v506 = vpack.c.b16 %v404, %v403
  %v507 = vpack.c.b16 %v406, %v405
  %v508 = vpack.c.b16 %v408, %v407
  %v509 = vpack.c.b16 %v410, %v409
  %v510 = vpack.c.b16 %v412, %v411
  %v511 = vpack.c.b16 %v414, %v413
  %v512 = vpack.c.b16 %v416, %v415
  %v513 = vpack.c.b16 %v418, %v417
  %v514 = vpack.c.b16 %v420, %v419
  %v515 = vpack.c.b16 %v422, %v421
  %v516 = vpack.c.b16 %v424, %v423
  %v517 = vpack.c.b16 %v426, %v425
  %v518 = vpack.c.b16 %v428, %v427
  %v519 = vpack.c.b16 %v430, %v429
  %v520 = vpack.c.b16 %v432, %v431
  %v521 = vpack.c.b16 %v434, %v433
  %v522 = vpack.c.b16 %v436, %v435
  %v523 = vpack.c.b16 %v438, %v437
  %v524 = vpack.c.b16 %v440, %v439
  %v525 = vpack.c.b16 %v442, %v441
  %v526 = vpack.c.b16 %v444, %v443
  %v527 = vpack.c.b16 %v446, %v445
  %v528 = vpack.c.b16 %v448, %v447
  %v529 = vpack.c.b16 %v450, %v449
  %v530 = vpack.c.b16 %v452, %v451
  %v531 = vpack.c.b16 %v454, %v453
  %v532 = vpack.c.b16 %v456, %v455
  %v533 = vpack.c.b16 %v458, %v457
  %v534 = vpack.c.b16 %v460, %v459
  %v535 = vpack.c.b16 %v462, %v461
  %v536 = vpack.c.b16 %v464, %v463
  %v537 = vpack.c.b16 %v466, %v465
  %v538 = vpack.c.b16 %v468, %v467
  %v539 = vpack.c.b16 %v470, %v469
  %v540 = vpack.c.b16 %v472, %v471
  %v541 = vpack.c.b16 %v474, %v473
  %v542 = vpack.c.b16 %v476, %v475
  %v543 = vpack.c.b16 %v478, %v477
  %v544 = vpack.c.b16 %v480, %v479
  %609 = vmatprep.subr.bf16.mxu0 0
  %610 = vmatpush1.bf16.msra.mxu0 %v481
  %611 = vmatprep.subr.bf16.mxu0 0
  %612 = vmatpush1.bf16.msra.mxu0 %v482
  %613 = vmatprep.subr.bf16.mxu0 0
  %614 = vmatpush1.bf16.msra.mxu0 %v483
  %615 = vmatprep.subr.bf16.mxu0 0
  %616 = vmatpush1.bf16.msra.mxu0 %v484
  %617 = vmatprep.subr.bf16.mxu0 0
  %618 = vmatpush1.bf16.msra.mxu0 %v485
  %619 = vmatprep.subr.bf16.mxu0 0
  %620 = vmatpush1.bf16.msra.mxu0 %v486
  %621 = vmatprep.subr.bf16.mxu0 0
  %622 = vmatpush1.bf16.msra.mxu0 %v487
  %623 = vmatprep.subr.bf16.mxu0 0
  %624 = vmatpush1.bf16.msra.mxu0 %v488
  %625 = vmatprep.subr.bf16.mxu0 0
  %626 = vmatpush1.bf16.msra.mxu0 %v489
  %627 = vmatprep.subr.bf16.mxu0 0
  %628 = vmatpush1.bf16.msra.mxu0 %v490
  %629 = vmatprep.subr.bf16.mxu0 0
  %630 = vmatpush1.bf16.msra.mxu0 %v491
  %631 = vmatprep.subr.bf16.mxu0 0
  %632 = vmatpush1.bf16.msra.mxu0 %v492
  %633 = vmatprep.subr.bf16.mxu0 0
  %634 = vmatpush1.bf16.msra.mxu0 %v493
  %635 = vmatprep.subr.bf16.mxu0 0
  %636 = vmatpush1.bf16.msra.mxu0 %v494
  %637 = vmatprep.subr.bf16.mxu0 0
  %638 = vmatpush1.bf16.msra.mxu0 %v495
  %639 = vmatprep.subr.bf16.mxu0 0
  %640 = vmatpush1.bf16.msra.mxu0 %v496
  %641 = vmatprep.mubr.bf16.mxu0 %v83
  %642 = vmatmul.mubr.bf16.gmra.mrb[0].mxu0 %v82
  %v643 = vpop.f32.mrb[0].mxu0
  %v644 = vadd.f32 %v223, %v643
  %v645 = vpop.f32.mrb[0].mxu0
  %v646 = vpop.f32.mrb[0].mxu0
  %v647 = vpop.f32.mrb[0].mxu0
  %648 = vdwg.mxu0
  %649 = vmatprep.subr.bf16.mxu0 0
  %650 = vmatpush1.bf16.msra.mxu0 %v497
  %651 = vmatprep.subr.bf16.mxu0 0
  %652 = vmatpush1.bf16.msra.mxu0 %v498
  %653 = vmatprep.subr.bf16.mxu0 0
  %654 = vmatpush1.bf16.msra.mxu0 %v499
  %655 = vmatprep.subr.bf16.mxu0 0
  %656 = vmatpush1.bf16.msra.mxu0 %v500
  %657 = vmatprep.subr.bf16.mxu0 0
  %658 = vmatpush1.bf16.msra.mxu0 %v501
  %659 = vmatprep.subr.bf16.mxu0 0
  %660 = vmatpush1.bf16.msra.mxu0 %v502
  %661 = vmatprep.subr.bf16.mxu0 0
  %662 = vmatpush1.bf16.msra.mxu0 %v503
  %663 = vmatprep.subr.bf16.mxu0 0
  %664 = vmatpush1.bf16.msra.mxu0 %v504
  %665 = vmatprep.subr.bf16.mxu0 0
  %666 = vmatpush1.bf16.msra.mxu0 %v505
  %667 = vmatprep.subr.bf16.mxu0 0
  %668 = vmatpush1.bf16.msra.mxu0 %v506
  %669 = vmatprep.subr.bf16.mxu0 0
  %670 = vmatpush1.bf16.msra.mxu0 %v507
  %671 = vmatprep.subr.bf16.mxu0 0
  %672 = vmatpush1.bf16.msra.mxu0 %v508
  %673 = vmatprep.subr.bf16.mxu0 0
  %674 = vmatpush1.bf16.msra.mxu0 %v509
  %675 = vmatprep.subr.bf16.mxu0 0
  %676 = vmatpush1.bf16.msra.mxu0 %v510
  %677 = vmatprep.subr.bf16.mxu0 0
  %678 = vmatpush1.bf16.msra.mxu0 %v511
  %679 = vmatprep.subr.bf16.mxu0 0
  %680 = vmatpush1.bf16.msra.mxu0 %v512
  %681 = vmatprep.mubr.bf16.mxu0 %v85
  %682 = vmatmul.mubr.bf16.gmra.mrb[0].mxu0 %v84
  %v683 = vpop.f32.mrb[0].mxu0
  %v684 = vadd.f32 %v644, %v683
  %v685 = vpop.f32.mrb[0].mxu0
  %v686 = vpop.f32.mrb[0].mxu0
  %v687 = vpop.f32.mrb[0].mxu0
  %688 = vdwg.mxu0
  %689 = vmatprep.subr.bf16.mxu0 0
  %690 = vmatpush1.bf16.msra.mxu0 %v513
  %691 = vmatprep.subr.bf16.mxu0 0
  %692 = vmatpush1.bf16.msra.mxu0 %v514
  %693 = vmatprep.subr.bf16.mxu0 0
  %694 = vmatpush1.bf16.msra.mxu0 %v515
  %695 = vmatprep.subr.bf16.mxu0 0
  %696 = vmatpush1.bf16.msra.mxu0 %v516
  %697 = vmatprep.subr.bf16.mxu0 0
  %698 = vmatpush1.bf16.msra.mxu0 %v517
  %699 = vmatprep.subr.bf16.mxu0 0
  %700 = vmatpush1.bf16.msra.mxu0 %v518
  %701 = vmatprep.subr.bf16.mxu0 0
  %702 = vmatpush1.bf16.msra.mxu0 %v519
  %703 = vmatprep.subr.bf16.mxu0 0
  %704 = vmatpush1.bf16.msra.mxu0 %v520
  %705 = vmatprep.subr.bf16.mxu0 0
  %706 = vmatpush1.bf16.msra.mxu0 %v521
  %707 = vmatprep.subr.bf16.mxu0 0
  %708 = vmatpush1.bf16.msra.mxu0 %v522
  %709 = vmatprep.subr.bf16.mxu0 0
  %710 = vmatpush1.bf16.msra.mxu0 %v523
  %711 = vmatprep.subr.bf16.mxu0 0
  %712 = vmatpush1.bf16.msra.mxu0 %v524
  %713 = vmatprep.subr.bf16.mxu0 0
  %714 = vmatpush1.bf16.msra.mxu0 %v525
  %715 = vmatprep.subr.bf16.mxu0 0
  %716 = vmatpush1.bf16.msra.mxu0 %v526
  %717 = vmatprep.subr.bf16.mxu0 0
  %718 = vmatpush1.bf16.msra.mxu0 %v527
  %719 = vmatprep.subr.bf16.mxu0 0
  %720 = vmatpush1.bf16.msra.mxu0 %v528
  %721 = vmatprep.mubr.bf16.mxu0 %v87
  %722 = vmatmul.mubr.bf16.gmra.mrb[0].mxu0 %v86
  %v723 = vpop.f32.mrb[0].mxu0
  %v724 = vadd.f32 %v684, %v723
  %v725 = vpop.f32.mrb[0].mxu0
  %v726 = vpop.f32.mrb[0].mxu0
  %v727 = vpop.f32.mrb[0].mxu0
  %728 = vdwg.mxu0
  %729 = vmatprep.subr.bf16.mxu0 0
  %730 = vmatpush1.bf16.msra.mxu0 %v529
  %731 = vmatprep.subr.bf16.mxu0 0
  %732 = vmatpush1.bf16.msra.mxu0 %v530
  %733 = vmatprep.subr.bf16.mxu0 0
  %734 = vmatpush1.bf16.msra.mxu0 %v531
  %735 = vmatprep.subr.bf16.mxu0 0
  %736 = vmatpush1.bf16.msra.mxu0 %v532
  %737 = vmatprep.subr.bf16.mxu0 0
  %738 = vmatpush1.bf16.msra.mxu0 %v533
  %739 = vmatprep.subr.bf16.mxu0 0
  %740 = vmatpush1.bf16.msra.mxu0 %v534
  %741 = vmatprep.subr.bf16.mxu0 0
  %742 = vmatpush1.bf16.msra.mxu0 %v535
  %743 = vmatprep.subr.bf16.mxu0 0
  %744 = vmatpush1.bf16.msra.mxu0 %v536
  %745 = vmatprep.subr.bf16.mxu0 0
  %746 = vmatpush1.bf16.msra.mxu0 %v537
  %747 = vmatprep.subr.bf16.mxu0 0
  %748 = vmatpush1.bf16.msra.mxu0 %v538
  %749 = vmatprep.subr.bf16.mxu0 0
  %750 = vmatpush1.bf16.msra.mxu0 %v539
  %751 = vmatprep.subr.bf16.mxu0 0
  %752 = vmatpush1.bf16.msra.mxu0 %v540
  %753 = vmatprep.subr.bf16.mxu0 0
  %754 = vmatpush1.bf16.msra.mxu0 %v541
  %755 = vmatprep.subr.bf16.mxu0 0
  %756 = vmatpush1.bf16.msra.mxu0 %v542
  %757 = vmatprep.subr.bf16.mxu0 0
  %758 = vmatpush1.bf16.msra.mxu0 %v543
  %759 = vmatprep.subr.bf16.mxu0 0
  %760 = vmatpush1.bf16.msra.mxu0 %v544
  %761 = vmatprep.mubr.bf16.mxu0 %v89
  %762 = vmatmul.mubr.bf16.gmra.mrb[0].mxu0 %v88
  %v763 = vpop.f32.mrb[0].mxu0
  %v764 = vadd.f32 %v724, %v763
  %v765 = vpop.f32.mrb[0].mxu0
  %v766 = vpop.f32.mrb[0].mxu0
  %v767 = vpop.f32.mrb[0].mxu0
  %768 = vdwg.mxu0
  %v769 = vmax.f32 %v764, 0.0
  %v770 = vld [vmem:[%s3] sm:$0xff]
  %v771 = vld [vmem:[%s3 + $0x8] sm:$0xff]
  %v772 = vld [vmem:[%s3 + $0x10] sm:$0xff]
  %v773 = vld [vmem:[%s3 + $0x18] sm:$0xff]
  %v774 = vld [vmem:[%s4] sm:$0x1]
  %v776 = vlaneseq
  %v777 = vshrl.u32 %v776, 7
  %v778 = vsub.s32 0, %v777
  %v779 = vrot.slane %v774, %v778
  %vm781 = vcmask 261120
  %v783 = vsel %vm781, %v769, 0
  %785 = vmatprep.subr.mxu0 0.0
  %786 = vmatpush1.msra.mxu0 %v770
  %787 = vmatprep.subr.mxu0 0.0
  %788 = vmatpush1.msra.mxu0 %v771
  %789 = vmatprep.subr.mxu0 0.0
  %790 = vmatpush1.msra.mxu0 %v772
  %791 = vmatprep.subr.mxu0 0.0
  %792 = vmatpush1.msra.mxu0 %v773
  %793 = vmatprep.subr.mxu0 0.0
  %794 = vmatpush1.msra.mxu0 0.0
  %795 = vmatprep.subr.mxu0 0.0
  %796 = vmatpush1.msra.mxu0 0.0
  %797 = vmatprep.subr.mxu0 0.0
  %798 = vmatpush1.msra.mxu0 0.0
  %799 = vmatprep.subr.mxu0 0.0
  %800 = vmatpush1.msra.mxu0 0.0
  %801 = vmatprep.subr.mxu0 0.0
  %802 = vmatpush1.msra.mxu0 0.0
  %803 = vmatprep.subr.mxu0 0.0
  %804 = vmatpush1.msra.mxu0 0.0
  %805 = vmatprep.subr.mxu0 0.0
  %806 = vmatpush1.msra.mxu0 0.0
  %807 = vmatprep.subr.mxu0 0.0
  %808 = vmatpush1.msra.mxu0 0.0
  %809 = vmatprep.subr.mxu0 0.0
  %810 = vmatpush1.msra.mxu0 0.0
  %811 = vmatprep.subr.mxu0 0.0
  %812 = vmatpush1.msra.mxu0 0.0
  %813 = vmatprep.subr.mxu0 0.0
  %814 = vmatpush1.msra.mxu0 0.0
  %815 = vmatprep.subr.mxu0 0.0
  %816 = vmatpush1.msra.mxu0 0.0
  %817 = vmatprep.subr.mxu0 0.0
  %818 = vmatpush1.msra.mxu0 0.0
  %819 = vmatprep.subr.mxu0 0.0
  %820 = vmatpush1.msra.mxu0 0.0
  %821 = vmatprep.subr.mxu0 0.0
  %822 = vmatpush1.msra.mxu0 0.0
  %823 = vmatprep.subr.mxu0 0.0
  %824 = vmatpush1.msra.mxu0 0.0
  %825 = vmatprep.subr.mxu0 0.0
  %826 = vmatpush1.msra.mxu0 0.0
  %827 = vmatprep.subr.mxu0 0.0
  %828 = vmatpush1.msra.mxu0 0.0
  %829 = vmatprep.subr.mxu0 0.0
  %830 = vmatpush1.msra.mxu0 0.0
  %831 = vmatprep.subr.mxu0 0.0
  %832 = vmatpush1.msra.mxu0 0.0
  %833 = vmatprep.subr.mxu0 0.0
  %834 = vmatpush1.msra.mxu0 0.0
  %835 = vmatprep.subr.mxu0 0.0
  %836 = vmatpush1.msra.mxu0 0.0
  %837 = vmatprep.subr.mxu0 0.0
  %838 = vmatpush1.msra.mxu0 0.0
  %839 = vmatprep.subr.mxu0 0.0
  %840 = vmatpush1.msra.mxu0 0.0
  %841 = vmatprep.subr.mxu0 0.0
  %842 = vmatpush1.msra.mxu0 0.0
  %843 = vmatprep.subr.mxu0 0.0
  %844 = vmatpush1.msra.mxu0 0.0
  %845 = vmatprep.subr.mxu0 0.0
  %846 = vmatpush1.msra.mxu0 0.0
  %847 = vmatprep.subr.mxu0 0.0
  %848 = vmatpush1.msra.mxu0 0.0
  %849 = vmatprep.mubr.f32.mxu0 0.0
  %850 = vmatmul.mubr.f32.gmra.mrb[0].mxu0 %v783
  %v851 = vpop.f32.mrb[0].mxu0
  %v852 = vadd.f32 %v779, %v851
  %v853 = vpop.f32.mrb[0].mxu0
  %854 = vdwg.mxu0
  %v855 = vmin.f32 %v852, 20.0
  %vm856 = vcmp.gt.f32.partialorder %v852, 20.0
  %v857 = vmul.f32 %v855, 1.442695
  %v858 = vpow.pop %v857
  %v859 = vadd.f32 %v858, 1.0
  %v860 = vlog2.pop %v859
  %v861 = vmul.f32 %v860, 0.6931472
  %v862 = vmul.f32 -0.5, %v858
  %v863 = vadd.f32 %v862, 1.0
  %v864 = vmul.f32 %v863, %v858
  %v865 = vand.u32 2147483647, %v858
  %vm866 = vcmp.lt.f32.partialorder %v865, 0.0004427343
  %v867 = vsel %vm866, %v864, %v861
  %v868 = vsel %vm856, %v852, %v867
  %869 = vst [vmem:[%s10] sm:$0xf0] 0.0
  %870 = vst [vmem:[%s10 + $0x8] sm:$0xf0] 0.0
  %871 = vst [vmem:[%s10 + $0x10] sm:$0xf0] 0.0
  %872 = vst [vmem:[%s10 + $0x18] sm:$0xf0] 0.0
  %873 = vst [vmem:[%s10 + $0x20] sm:$0xf0] 0.0
  %874 = vst [vmem:[%s10 + $0x28] sm:$0xf0] 0.0
  %875 = vst [vmem:[%s10 + $0x30] sm:$0xf0] 0.0
  %876 = vst [vmem:[%s10 + $0x38] sm:$0xf0] 0.0
  %v878 = vrot.slane %v852, 4
  %879 = vrot.lane.b32.xlu0 %v878, 8
  %v880 = vpop.permute.xlu0 %879
  %vm882 = vcmask 128068
  %883 = vst.msk [vmem:[%s10] sm:$0x30] %vm882, %v880
  %v885 = vrot.slane %v868, 4
  %886 = vrot.lane.b32.xlu0 %v885, 8
  %v887 = vpop.permute.xlu0 %886
  %vm889 = vcmask 193668
  %890 = vst.msk [vmem:[%s10] sm:$0x30] %vm889, %v887
  %v891 = vld [vmem:[%s9] sm:$0x3]
  %893 = vrot.lane.b32.xlu0 %v891, 8
  %v894 = vpop.permute.xlu0 %893
  %v896 = vmul.f32 %v868, %v894
  %898 = vrot.lane.b32.xlu0 %v896, 120
  %v899 = vpop.permute.xlu0 %898
  %v901 = vadd.f32 %v852, %v899
  %v903 = vrot.slane %v901, 4
  %vm905 = vcmask 62468
  %906 = vst.msk [vmem:[%s10] sm:$0x30] %vm905, %v903
  %v907 = vld [vmem:[%s5] sm:$0xff]
  %v908 = vld [vmem:[%s6] sm:$0x1]
  %v910 = vlaneseq
  %v911 = vshrl.u32 %v910, 7
  %v912 = vsub.s32 0, %v911
  %v913 = vrot.slane %v908, %v912
  %vm915 = vcmask 64512
  %v916 = vsel %vm915, %v901, 0
  %918 = vmatprep.subr.mxu0 0.0
  %919 = vmatpush1.msra.mxu0 %v907
  %920 = vmatprep.subr.mxu0 0.0
  %921 = vmatpush1.msra.mxu0 0.0
  %922 = vmatprep.subr.mxu0 0.0
  %923 = vmatpush1.msra.mxu0 0.0
  %924 = vmatprep.subr.mxu0 0.0
  %925 = vmatpush1.msra.mxu0 0.0
  %926 = vmatprep.subr.mxu0 0.0
  %927 = vmatpush1.msra.mxu0 0.0
  %928 = vmatprep.subr.mxu0 0.0
  %929 = vmatpush1.msra.mxu0 0.0
  %930 = vmatprep.subr.mxu0 0.0
  %931 = vmatpush1.msra.mxu0 0.0
  %932 = vmatprep.subr.mxu0 0.0
  %933 = vmatpush1.msra.mxu0 0.0
  %934 = vmatprep.subr.mxu0 0.0
  %935 = vmatpush1.msra.mxu0 0.0
  %936 = vmatprep.subr.mxu0 0.0
  %937 = vmatpush1.msra.mxu0 0.0
  %938 = vmatprep.subr.mxu0 0.0
  %939 = vmatpush1.msra.mxu0 0.0
  %940 = vmatprep.subr.mxu0 0.0
  %941 = vmatpush1.msra.mxu0 0.0
  %942 = vmatprep.subr.mxu0 0.0
  %943 = vmatpush1.msra.mxu0 0.0
  %944 = vmatprep.subr.mxu0 0.0
  %945 = vmatpush1.msra.mxu0 0.0
  %946 = vmatprep.subr.mxu0 0.0
  %947 = vmatpush1.msra.mxu0 0.0
  %948 = vmatprep.subr.mxu0 0.0
  %949 = vmatpush1.msra.mxu0 0.0
  %950 = vmatprep.subr.mxu0 0.0
  %951 = vmatpush1.msra.mxu0 0.0
  %952 = vmatprep.subr.mxu0 0.0
  %953 = vmatpush1.msra.mxu0 0.0
  %954 = vmatprep.subr.mxu0 0.0
  %955 = vmatpush1.msra.mxu0 0.0
  %956 = vmatprep.subr.mxu0 0.0
  %957 = vmatpush1.msra.mxu0 0.0
  %958 = vmatprep.subr.mxu0 0.0
  %959 = vmatpush1.msra.mxu0 0.0
  %960 = vmatprep.subr.mxu0 0.0
  %961 = vmatpush1.msra.mxu0 0.0
  %962 = vmatprep.subr.mxu0 0.0
  %963 = vmatpush1.msra.mxu0 0.0
  %964 = vmatprep.subr.mxu0 0.0
  %965 = vmatpush1.msra.mxu0 0.0
  %966 = vmatprep.subr.mxu0 0.0
  %967 = vmatpush1.msra.mxu0 0.0
  %968 = vmatprep.subr.mxu0 0.0
  %969 = vmatpush1.msra.mxu0 0.0
  %970 = vmatprep.subr.mxu0 0.0
  %971 = vmatpush1.msra.mxu0 0.0
  %972 = vmatprep.subr.mxu0 0.0
  %973 = vmatpush1.msra.mxu0 0.0
  %974 = vmatprep.subr.mxu0 0.0
  %975 = vmatpush1.msra.mxu0 0.0
  %976 = vmatprep.subr.mxu0 0.0
  %977 = vmatpush1.msra.mxu0 0.0
  %978 = vmatprep.subr.mxu0 0.0
  %979 = vmatpush1.msra.mxu0 0.0
  %980 = vmatprep.subr.mxu0 0.0
  %981 = vmatpush1.msra.mxu0 0.0
  %982 = vmatprep.mubr.f32.mxu0 0.0
  %983 = vmatmul.mubr.f32.gmra.mrb[0].mxu0 %v916
  %v984 = vpop.f32.mrb[0].mxu0
  %v985 = vadd.f32 %v913, %v984
  %v986 = vpop.f32.mrb[0].mxu0
  %987 = vdwg.mxu0
  %v988 = vmax.f32 %v985, 0.0
  %v989 = vpack.c.bf16 %v988, %v988
  %v990 = vld [vmem:[%s7] sm:$0xff]
  %v991 = vld [vmem:[%s7 + $0x8] sm:$0xff]
  %v992 = vld [vmem:[%s7 + $0x10] sm:$0xff]
  %v993 = vld [vmem:[%s7 + $0x18] sm:$0xff]
  %v994 = vld [vmem:[%s7 + $0x20] sm:$0xff]
  %v995 = vld [vmem:[%s7 + $0x28] sm:$0xff]
  %v996 = vld [vmem:[%s7 + $0x30] sm:$0xff]
  %v997 = vld [vmem:[%s7 + $0x38] sm:$0xff]
  %v998 = vld [vmem:[%s7 + $0x40] sm:$0xff]
  %v999 = vld [vmem:[%s7 + $0x48] sm:$0xff]
  %v1000 = vld [vmem:[%s7 + $0x50] sm:$0xff]
  %v1001 = vld [vmem:[%s7 + $0x58] sm:$0xff]
  %v1002 = vld [vmem:[%s7 + $0x60] sm:$0xff]
  %v1003 = vld [vmem:[%s7 + $0x68] sm:$0xff]
  %v1004 = vld [vmem:[%s7 + $0x70] sm:$0xff]
  %v1005 = vld [vmem:[%s7 + $0x78] sm:$0xff]
  %v1006 = vld [vmem:[%s8] sm:$0xff]
  %v1008 = vlaneseq
  %v1009 = vshrl.u32 %v1008, 7
  %v1010 = vsub.s32 0, %v1009
  %v1011 = vrot.slane %v1006, %v1010
  %v1012 = vlaneseq
  %v1013 = vshrl.u32 %v1012, 7
  %v1014 = vsub.s32 1, %v1013
  %v1015 = vrot.slane %v1006, %v1014
  %v1016 = vlaneseq
  %v1017 = vshrl.u32 %v1016, 7
  %v1018 = vsub.s32 2, %v1017
  %v1019 = vrot.slane %v1006, %v1018
  %v1020 = vlaneseq
  %v1021 = vshrl.u32 %v1020, 7
  %v1022 = vsub.s32 3, %v1021
  %v1023 = vrot.slane %v1006, %v1022
  %v1024 = vlaneseq
  %v1025 = vshrl.u32 %v1024, 7
  %v1026 = vsub.s32 4, %v1025
  %v1027 = vrot.slane %v1006, %v1026
  %v1028 = vlaneseq
  %v1029 = vshrl.u32 %v1028, 7
  %v1030 = vsub.s32 5, %v1029
  %v1031 = vrot.slane %v1006, %v1030
  %v1032 = vlaneseq
  %v1033 = vshrl.u32 %v1032, 7
  %v1034 = vsub.s32 6, %v1033
  %v1035 = vrot.slane %v1006, %v1034
  %v1036 = vlaneseq
  %v1037 = vshrl.u32 %v1036, 7
  %v1038 = vsub.s32 7, %v1037
  %v1039 = vrot.slane %v1006, %v1038
  %v1064 = vunpack.c.l.b16 %v990
  %v1065 = vunpack.c.h.b16 %v990
  %v1066 = vunpack.c.l.b16 %v991
  %v1067 = vunpack.c.h.b16 %v991
  %v1068 = vunpack.c.l.b16 %v992
  %v1069 = vunpack.c.h.b16 %v992
  %v1070 = vunpack.c.l.b16 %v993
  %v1071 = vunpack.c.h.b16 %v993
  %v1072 = vunpack.c.l.b16 %v994
  %v1073 = vunpack.c.h.b16 %v994
  %v1074 = vunpack.c.l.b16 %v995
  %v1075 = vunpack.c.h.b16 %v995
  %v1076 = vunpack.c.l.b16 %v996
  %v1077 = vunpack.c.h.b16 %v996
  %v1078 = vunpack.c.l.b16 %v997
  %v1079 = vunpack.c.h.b16 %v997
  %v1080 = vunpack.c.l.b16 %v998
  %v1081 = vunpack.c.h.b16 %v998
  %v1082 = vunpack.c.l.b16 %v999
  %v1083 = vunpack.c.h.b16 %v999
  %v1084 = vunpack.c.l.b16 %v1000
  %v1085 = vunpack.c.h.b16 %v1000
  %v1086 = vunpack.c.l.b16 %v1001
  %v1087 = vunpack.c.h.b16 %v1001
  %v1088 = vunpack.c.l.b16 %v1002
  %v1089 = vunpack.c.h.b16 %v1002
  %v1090 = vunpack.c.l.b16 %v1003
  %v1091 = vunpack.c.h.b16 %v1003
  %v1092 = vunpack.c.l.b16 %v1004
  %v1093 = vunpack.c.h.b16 %v1004
  %v1094 = vunpack.c.l.b16 %v1005
  %v1095 = vunpack.c.h.b16 %v1005
  %v1096 = vpack.c.b16 %v1072, %v1064
  %v1097 = vpack.c.b16 %v1073, %v1065
  %v1098 = vpack.c.b16 %v1074, %v1066
  %v1099 = vpack.c.b16 %v1075, %v1067
  %v1100 = vpack.c.b16 %v1076, %v1068
  %v1101 = vpack.c.b16 %v1077, %v1069
  %v1102 = vpack.c.b16 %v1078, %v1070
  %v1103 = vpack.c.b16 %v1079, %v1071
  %v1104 = vpack.c.b16 %v1088, %v1080
  %v1105 = vpack.c.b16 %v1089, %v1081
  %v1106 = vpack.c.b16 %v1090, %v1082
  %v1107 = vpack.c.b16 %v1091, %v1083
  %v1108 = vpack.c.b16 %v1092, %v1084
  %v1109 = vpack.c.b16 %v1093, %v1085
  %v1110 = vpack.c.b16 %v1094, %v1086
  %v1111 = vpack.c.b16 %v1095, %v1087
  %v1129 = vsel %vm781, %v989, 0
  %1131 = vmatprep.subr.bf16.mxu0 %v1097
  %1132 = vmatpush1.bf16.msra.mxu0 %v1096
  %1133 = vmatprep.subr.bf16.mxu0 %v1105
  %1134 = vmatpush1.bf16.msra.mxu0 %v1104
  %1135 = vmatprep.subr.bf16.mxu0 0
  %1136 = vmatpush1.bf16.msra.mxu0 0
  %1137 = vmatprep.subr.bf16.mxu0 0
  %1138 = vmatpush1.bf16.msra.mxu0 0
  %1139 = vmatprep.subr.bf16.mxu0 0
  %1140 = vmatpush1.bf16.msra.mxu0 0
  %1141 = vmatprep.subr.bf16.mxu0 0
  %1142 = vmatpush1.bf16.msra.mxu0 0
  %1143 = vmatprep.subr.bf16.mxu0 0
  %1144 = vmatpush1.bf16.msra.mxu0 0
  %1145 = vmatprep.subr.bf16.mxu0 0
  %1146 = vmatpush1.bf16.msra.mxu0 0
  %1147 = vmatprep.subr.bf16.mxu0 0
  %1148 = vmatpush1.bf16.msra.mxu0 0
  %1149 = vmatprep.subr.bf16.mxu0 0
  %1150 = vmatpush1.bf16.msra.mxu0 0
  %1151 = vmatprep.subr.bf16.mxu0 0
  %1152 = vmatpush1.bf16.msra.mxu0 0
  %1153 = vmatprep.subr.bf16.mxu0 0
  %1154 = vmatpush1.bf16.msra.mxu0 0
  %1155 = vmatprep.subr.bf16.mxu0 0
  %1156 = vmatpush1.bf16.msra.mxu0 0
  %1157 = vmatprep.subr.bf16.mxu0 0
  %1158 = vmatpush1.bf16.msra.mxu0 0
  %1159 = vmatprep.subr.bf16.mxu0 0
  %1160 = vmatpush1.bf16.msra.mxu0 0
  %1161 = vmatprep.subr.bf16.mxu0 0
  %1162 = vmatpush1.bf16.msra.mxu0 0
  %1163 = vmatprep.mubr.bf16.mxu0 0
  %1164 = vmatmul.mubr.bf16.gmra.mrb[0].mxu0 %v1129
  %v1165 = vpop.f32.mrb[0].mxu0
  %v1166 = vadd.f32 %v1011, %v1165
  %v1167 = vpop.f32.mrb[0].mxu0
  %v1168 = vadd.f32 %v1015, %v1167
  %v1169 = vpop.f32.mrb[0].mxu0
  %v1170 = vpop.f32.mrb[0].mxu0
  %1171 = vdwg.mxu0
  %1172 = vmatprep.subr.bf16.mxu0 %v1099
  %1173 = vmatpush1.bf16.msra.mxu0 %v1098
  %1174 = vmatprep.subr.bf16.mxu0 %v1107
  %1175 = vmatpush1.bf16.msra.mxu0 %v1106
  %1176 = vmatprep.subr.bf16.mxu0 0
  %1177 = vmatpush1.bf16.msra.mxu0 0
  %1178 = vmatprep.subr.bf16.mxu0 0
  %1179 = vmatpush1.bf16.msra.mxu0 0
  %1180 = vmatprep.subr.bf16.mxu0 0
  %1181 = vmatpush1.bf16.msra.mxu0 0
  %1182 = vmatprep.subr.bf16.mxu0 0
  %1183 = vmatpush1.bf16.msra.mxu0 0
  %1184 = vmatprep.subr.bf16.mxu0 0
  %1185 = vmatpush1.bf16.msra.mxu0 0
  %1186 = vmatprep.subr.bf16.mxu0 0
  %1187 = vmatpush1.bf16.msra.mxu0 0
  %1188 = vmatprep.subr.bf16.mxu0 0
  %1189 = vmatpush1.bf16.msra.mxu0 0
  %1190 = vmatprep.subr.bf16.mxu0 0
  %1191 = vmatpush1.bf16.msra.mxu0 0
  %1192 = vmatprep.subr.bf16.mxu0 0
  %1193 = vmatpush1.bf16.msra.mxu0 0
  %1194 = vmatprep.subr.bf16.mxu0 0
  %1195 = vmatpush1.bf16.msra.mxu0 0
  %1196 = vmatprep.subr.bf16.mxu0 0
  %1197 = vmatpush1.bf16.msra.mxu0 0
  %1198 = vmatprep.subr.bf16.mxu0 0
  %1199 = vmatpush1.bf16.msra.mxu0 0
  %1200 = vmatprep.subr.bf16.mxu0 0
  %1201 = vmatpush1.bf16.msra.mxu0 0
  %1202 = vmatprep.subr.bf16.mxu0 0
  %1203 = vmatpush1.bf16.msra.mxu0 0
  %1204 = vmatprep.mubr.bf16.mxu0 0
  %1205 = vmatmul.mubr.bf16.gmra.mrb[0].mxu0 %v1129
  %v1206 = vpop.f32.mrb[0].mxu0
  %v1207 = vadd.f32 %v1019, %v1206
  %v1208 = vpop.f32.mrb[0].mxu0
  %v1209 = vadd.f32 %v1023, %v1208
  %v1210 = vpop.f32.mrb[0].mxu0
  %v1211 = vpop.f32.mrb[0].mxu0
  %1212 = vdwg.mxu0
  %1213 = vmatprep.subr.bf16.mxu0 %v1101
  %1214 = vmatpush1.bf16.msra.mxu0 %v1100
  %1215 = vmatprep.subr.bf16.mxu0 %v1109
  %1216 = vmatpush1.bf16.msra.mxu0 %v1108
  %1217 = vmatprep.subr.bf16.mxu0 0
  %1218 = vmatpush1.bf16.msra.mxu0 0
  %1219 = vmatprep.subr.bf16.mxu0 0
  %1220 = vmatpush1.bf16.msra.mxu0 0
  %1221 = vmatprep.subr.bf16.mxu0 0
  %1222 = vmatpush1.bf16.msra.mxu0 0
  %1223 = vmatprep.subr.bf16.mxu0 0
  %1224 = vmatpush1.bf16.msra.mxu0 0
  %1225 = vmatprep.subr.bf16.mxu0 0
  %1226 = vmatpush1.bf16.msra.mxu0 0
  %1227 = vmatprep.subr.bf16.mxu0 0
  %1228 = vmatpush1.bf16.msra.mxu0 0
  %1229 = vmatprep.subr.bf16.mxu0 0
  %1230 = vmatpush1.bf16.msra.mxu0 0
  %1231 = vmatprep.subr.bf16.mxu0 0
  %1232 = vmatpush1.bf16.msra.mxu0 0
  %1233 = vmatprep.subr.bf16.mxu0 0
  %1234 = vmatpush1.bf16.msra.mxu0 0
  %1235 = vmatprep.subr.bf16.mxu0 0
  %1236 = vmatpush1.bf16.msra.mxu0 0
  %1237 = vmatprep.subr.bf16.mxu0 0
  %1238 = vmatpush1.bf16.msra.mxu0 0
  %1239 = vmatprep.subr.bf16.mxu0 0
  %1240 = vmatpush1.bf16.msra.mxu0 0
  %1241 = vmatprep.subr.bf16.mxu0 0
  %1242 = vmatpush1.bf16.msra.mxu0 0
  %1243 = vmatprep.subr.bf16.mxu0 0
  %1244 = vmatpush1.bf16.msra.mxu0 0
  %1245 = vmatprep.mubr.bf16.mxu0 0
  %1246 = vmatmul.mubr.bf16.gmra.mrb[0].mxu0 %v1129
  %v1247 = vpop.f32.mrb[0].mxu0
  %v1248 = vadd.f32 %v1027, %v1247
  %v1249 = vpop.f32.mrb[0].mxu0
  %v1250 = vadd.f32 %v1031, %v1249
  %v1251 = vpop.f32.mrb[0].mxu0
  %v1252 = vpop.f32.mrb[0].mxu0
  %1253 = vdwg.mxu0
  %1254 = vmatprep.subr.bf16.mxu0 %v1103
  %1255 = vmatpush1.bf16.msra.mxu0 %v1102
  %1256 = vmatprep.subr.bf16.mxu0 %v1111
  %1257 = vmatpush1.bf16.msra.mxu0 %v1110
  %1258 = vmatprep.subr.bf16.mxu0 0
  %1259 = vmatpush1.bf16.msra.mxu0 0
  %1260 = vmatprep.subr.bf16.mxu0 0
  %1261 = vmatpush1.bf16.msra.mxu0 0
  %1262 = vmatprep.subr.bf16.mxu0 0
  %1263 = vmatpush1.bf16.msra.mxu0 0
  %1264 = vmatprep.subr.bf16.mxu0 0
  %1265 = vmatpush1.bf16.msra.mxu0 0
  %1266 = vmatprep.subr.bf16.mxu0 0
  %1267 = vmatpush1.bf16.msra.mxu0 0
  %1268 = vmatprep.subr.bf16.mxu0 0
  %1269 = vmatpush1.bf16.msra.mxu0 0
  %1270 = vmatprep.subr.bf16.mxu0 0
  %1271 = vmatpush1.bf16.msra.mxu0 0
  %1272 = vmatprep.subr.bf16.mxu0 0
  %1273 = vmatpush1.bf16.msra.mxu0 0
  %1274 = vmatprep.subr.bf16.mxu0 0
  %1275 = vmatpush1.bf16.msra.mxu0 0
  %1276 = vmatprep.subr.bf16.mxu0 0
  %1277 = vmatpush1.bf16.msra.mxu0 0
  %1278 = vmatprep.subr.bf16.mxu0 0
  %1279 = vmatpush1.bf16.msra.mxu0 0
  %1280 = vmatprep.subr.bf16.mxu0 0
  %1281 = vmatpush1.bf16.msra.mxu0 0
  %1282 = vmatprep.subr.bf16.mxu0 0
  %1283 = vmatpush1.bf16.msra.mxu0 0
  %1284 = vmatprep.subr.bf16.mxu0 0
  %1285 = vmatpush1.bf16.msra.mxu0 0
  %1286 = vmatprep.mubr.bf16.mxu0 0
  %1287 = vmatmul.mubr.bf16.gmra.mrb[0].mxu0 %v1129
  %v1288 = vpop.f32.mrb[0].mxu0
  %v1289 = vadd.f32 %v1035, %v1288
  %v1290 = vpop.f32.mrb[0].mxu0
  %v1291 = vadd.f32 %v1039, %v1290
  %v1292 = vpop.f32.mrb[0].mxu0
  %v1293 = vpop.f32.mrb[0].mxu0
  %1294 = vdwg.mxu0
  %1295 = vst [vmem:[%s10] sm:$0x3] %v1166
  %1296 = vst [vmem:[%s10 + $0x8] sm:$0x3] %v1168
  %1297 = vst [vmem:[%s10 + $0x10] sm:$0x3] %v1207
  %1298 = vst [vmem:[%s10 + $0x18] sm:$0x3] %v1209
  %1299 = vst [vmem:[%s10 + $0x20] sm:$0x3] %v1248
  %1300 = vst [vmem:[%s10 + $0x28] sm:$0x3] %v1250
  %1301 = vst [vmem:[%s10 + $0x30] sm:$0x3] %v1289
  %1302 = vst [vmem:[%s10 + $0x38] sm:$0x3] %v1291
  %v1303 = vld [vmem:[%s9 + $0x2] sm:$0x3]
  %1305 = vrot.lane.b32.xlu0 %v1303, 8
  %v1306 = vpop.permute.xlu0 %1305
  %v1308 = vmul.f32 %v868, %v1306
  %1310 = vrot.lane.b32.xlu0 %v1308, 120
  %v1311 = vpop.permute.xlu0 %1310
  %v1313 = vadd.f32 %v852, %v1311
  %v1315 = vrot.slane %v1313, 2
  %vm1317 = vcmask 64518
  %1318 = vst.msk [vmem:[%s10] sm:$0xc0] %vm1317, %v1315
  %v1319 = vld [vmem:[%s5] sm:$0xff]
  %v1320 = vld [vmem:[%s6] sm:$0x1]
  %v1322 = vlaneseq
  %v1323 = vshrl.u32 %v1322, 7
  %v1324 = vsub.s32 0, %v1323
  %v1325 = vrot.slane %v1320, %v1324
  %v1327 = vsel %vm915, %v1313, 0
  %1329 = vmatprep.subr.mxu0 0.0
  %1330 = vmatpush1.msra.mxu0 %v1319
  %1331 = vmatprep.subr.mxu0 0.0
  %1332 = vmatpush1.msra.mxu0 0.0
  %1333 = vmatprep.subr.mxu0 0.0
  %1334 = vmatpush1.msra.mxu0 0.0
  %1335 = vmatprep.subr.mxu0 0.0
  %1336 = vmatpush1.msra.mxu0 0.0
  %1337 = vmatprep.subr.mxu0 0.0
  %1338 = vmatpush1.msra.mxu0 0.0
  %1339 = vmatprep.subr.mxu0 0.0
  %1340 = vmatpush1.msra.mxu0 0.0
  %1341 = vmatprep.subr.mxu0 0.0
  %1342 = vmatpush1.msra.mxu0 0.0
  %1343 = vmatprep.subr.mxu0 0.0
  %1344 = vmatpush1.msra.mxu0 0.0
  %1345 = vmatprep.subr.mxu0 0.0
  %1346 = vmatpush1.msra.mxu0 0.0
  %1347 = vmatprep.subr.mxu0 0.0
  %1348 = vmatpush1.msra.mxu0 0.0
  %1349 = vmatprep.subr.mxu0 0.0
  %1350 = vmatpush1.msra.mxu0 0.0
  %1351 = vmatprep.subr.mxu0 0.0
  %1352 = vmatpush1.msra.mxu0 0.0
  %1353 = vmatprep.subr.mxu0 0.0
  %1354 = vmatpush1.msra.mxu0 0.0
  %1355 = vmatprep.subr.mxu0 0.0
  %1356 = vmatpush1.msra.mxu0 0.0
  %1357 = vmatprep.subr.mxu0 0.0
  %1358 = vmatpush1.msra.mxu0 0.0
  %1359 = vmatprep.subr.mxu0 0.0
  %1360 = vmatpush1.msra.mxu0 0.0
  %1361 = vmatprep.subr.mxu0 0.0
  %1362 = vmatpush1.msra.mxu0 0.0
  %1363 = vmatprep.subr.mxu0 0.0
  %1364 = vmatpush1.msra.mxu0 0.0
  %1365 = vmatprep.subr.mxu0 0.0
  %1366 = vmatpush1.msra.mxu0 0.0
  %1367 = vmatprep.subr.mxu0 0.0
  %1368 = vmatpush1.msra.mxu0 0.0
  %1369 = vmatprep.subr.mxu0 0.0
  %1370 = vmatpush1.msra.mxu0 0.0
  %1371 = vmatprep.subr.mxu0 0.0
  %1372 = vmatpush1.msra.mxu0 0.0
  %1373 = vmatprep.subr.mxu0 0.0
  %1374 = vmatpush1.msra.mxu0 0.0
  %1375 = vmatprep.subr.mxu0 0.0
  %1376 = vmatpush1.msra.mxu0 0.0
  %1377 = vmatprep.subr.mxu0 0.0
  %1378 = vmatpush1.msra.mxu0 0.0
  %1379 = vmatprep.subr.mxu0 0.0
  %1380 = vmatpush1.msra.mxu0 0.0
  %1381 = vmatprep.subr.mxu0 0.0
  %1382 = vmatpush1.msra.mxu0 0.0
  %1383 = vmatprep.subr.mxu0 0.0
  %1384 = vmatpush1.msra.mxu0 0.0
  %1385 = vmatprep.subr.mxu0 0.0
  %1386 = vmatpush1.msra.mxu0 0.0
  %1387 = vmatprep.subr.mxu0 0.0
  %1388 = vmatpush1.msra.mxu0 0.0
  %1389 = vmatprep.subr.mxu0 0.0
  %1390 = vmatpush1.msra.mxu0 0.0
  %1391 = vmatprep.subr.mxu0 0.0
  %1392 = vmatpush1.msra.mxu0 0.0
  %1393 = vmatprep.mubr.f32.mxu0 0.0
  %1394 = vmatmul.mubr.f32.gmra.mrb[0].mxu0 %v1327
  %v1395 = vpop.f32.mrb[0].mxu0
  %v1396 = vadd.f32 %v1325, %v1395
  %v1397 = vpop.f32.mrb[0].mxu0
  %1398 = vdwg.mxu0
  %v1399 = vmax.f32 %v1396, 0.0
  %v1400 = vpack.c.bf16 %v1399, %v1399
  %v1401 = vld [vmem:[%s7] sm:$0xff]
  %v1402 = vld [vmem:[%s7 + $0x8] sm:$0xff]
  %v1403 = vld [vmem:[%s7 + $0x10] sm:$0xff]
  %v1404 = vld [vmem:[%s7 + $0x18] sm:$0xff]
  %v1405 = vld [vmem:[%s7 + $0x20] sm:$0xff]
  %v1406 = vld [vmem:[%s7 + $0x28] sm:$0xff]
  %v1407 = vld [vmem:[%s7 + $0x30] sm:$0xff]
  %v1408 = vld [vmem:[%s7 + $0x38] sm:$0xff]
  %v1409 = vld [vmem:[%s7 + $0x40] sm:$0xff]
  %v1410 = vld [vmem:[%s7 + $0x48] sm:$0xff]
  %v1411 = vld [vmem:[%s7 + $0x50] sm:$0xff]
  %v1412 = vld [vmem:[%s7 + $0x58] sm:$0xff]
  %v1413 = vld [vmem:[%s7 + $0x60] sm:$0xff]
  %v1414 = vld [vmem:[%s7 + $0x68] sm:$0xff]
  %v1415 = vld [vmem:[%s7 + $0x70] sm:$0xff]
  %v1416 = vld [vmem:[%s7 + $0x78] sm:$0xff]
  %v1417 = vld [vmem:[%s8] sm:$0xff]
  %v1419 = vlaneseq
  %v1420 = vshrl.u32 %v1419, 7
  %v1421 = vsub.s32 0, %v1420
  %v1422 = vrot.slane %v1417, %v1421
  %v1423 = vlaneseq
  %v1424 = vshrl.u32 %v1423, 7
  %v1425 = vsub.s32 1, %v1424
  %v1426 = vrot.slane %v1417, %v1425
  %v1427 = vlaneseq
  %v1428 = vshrl.u32 %v1427, 7
  %v1429 = vsub.s32 2, %v1428
  %v1430 = vrot.slane %v1417, %v1429
  %v1431 = vlaneseq
  %v1432 = vshrl.u32 %v1431, 7
  %v1433 = vsub.s32 3, %v1432
  %v1434 = vrot.slane %v1417, %v1433
  %v1435 = vlaneseq
  %v1436 = vshrl.u32 %v1435, 7
  %v1437 = vsub.s32 4, %v1436
  %v1438 = vrot.slane %v1417, %v1437
  %v1439 = vlaneseq
  %v1440 = vshrl.u32 %v1439, 7
  %v1441 = vsub.s32 5, %v1440
  %v1442 = vrot.slane %v1417, %v1441
  %v1443 = vlaneseq
  %v1444 = vshrl.u32 %v1443, 7
  %v1445 = vsub.s32 6, %v1444
  %v1446 = vrot.slane %v1417, %v1445
  %v1447 = vlaneseq
  %v1448 = vshrl.u32 %v1447, 7
  %v1449 = vsub.s32 7, %v1448
  %v1450 = vrot.slane %v1417, %v1449
  %v1475 = vunpack.c.l.b16 %v1401
  %v1476 = vunpack.c.h.b16 %v1401
  %v1477 = vunpack.c.l.b16 %v1402
  %v1478 = vunpack.c.h.b16 %v1402
  %v1479 = vunpack.c.l.b16 %v1403
  %v1480 = vunpack.c.h.b16 %v1403
  %v1481 = vunpack.c.l.b16 %v1404
  %v1482 = vunpack.c.h.b16 %v1404
  %v1483 = vunpack.c.l.b16 %v1405
  %v1484 = vunpack.c.h.b16 %v1405
  %v1485 = vunpack.c.l.b16 %v1406
  %v1486 = vunpack.c.h.b16 %v1406
  %v1487 = vunpack.c.l.b16 %v1407
  %v1488 = vunpack.c.h.b16 %v1407
  %v1489 = vunpack.c.l.b16 %v1408
  %v1490 = vunpack.c.h.b16 %v1408
  %v1491 = vunpack.c.l.b16 %v1409
  %v1492 = vunpack.c.h.b16 %v1409
  %v1493 = vunpack.c.l.b16 %v1410
  %v1494 = vunpack.c.h.b16 %v1410
  %v1495 = vunpack.c.l.b16 %v1411
  %v1496 = vunpack.c.h.b16 %v1411
  %v1497 = vunpack.c.l.b16 %v1412
  %v1498 = vunpack.c.h.b16 %v1412
  %v1499 = vunpack.c.l.b16 %v1413
  %v1500 = vunpack.c.h.b16 %v1413
  %v1501 = vunpack.c.l.b16 %v1414
  %v1502 = vunpack.c.h.b16 %v1414
  %v1503 = vunpack.c.l.b16 %v1415
  %v1504 = vunpack.c.h.b16 %v1415
  %v1505 = vunpack.c.l.b16 %v1416
  %v1506 = vunpack.c.h.b16 %v1416
  %v1507 = vpack.c.b16 %v1483, %v1475
  %v1508 = vpack.c.b16 %v1484, %v1476
  %v1509 = vpack.c.b16 %v1485, %v1477
  %v1510 = vpack.c.b16 %v1486, %v1478
  %v1511 = vpack.c.b16 %v1487, %v1479
  %v1512 = vpack.c.b16 %v1488, %v1480
  %v1513 = vpack.c.b16 %v1489, %v1481
  %v1514 = vpack.c.b16 %v1490, %v1482
  %v1515 = vpack.c.b16 %v1499, %v1491
  %v1516 = vpack.c.b16 %v1500, %v1492
  %v1517 = vpack.c.b16 %v1501, %v1493
  %v1518 = vpack.c.b16 %v1502, %v1494
  %v1519 = vpack.c.b16 %v1503, %v1495
  %v1520 = vpack.c.b16 %v1504, %v1496
  %v1521 = vpack.c.b16 %v1505, %v1497
  %v1522 = vpack.c.b16 %v1506, %v1498
  %v1540 = vsel %vm781, %v1400, 0
  %1542 = vmatprep.subr.bf16.mxu0 %v1508
  %1543 = vmatpush1.bf16.msra.mxu0 %v1507
  %1544 = vmatprep.subr.bf16.mxu0 %v1516
  %1545 = vmatpush1.bf16.msra.mxu0 %v1515
  %1546 = vmatprep.subr.bf16.mxu0 0
  %1547 = vmatpush1.bf16.msra.mxu0 0
  %1548 = vmatprep.subr.bf16.mxu0 0
  %1549 = vmatpush1.bf16.msra.mxu0 0
  %1550 = vmatprep.subr.bf16.mxu0 0
  %1551 = vmatpush1.bf16.msra.mxu0 0
  %1552 = vmatprep.subr.bf16.mxu0 0
  %1553 = vmatpush1.bf16.msra.mxu0 0
  %1554 = vmatprep.subr.bf16.mxu0 0
  %1555 = vmatpush1.bf16.msra.mxu0 0
  %1556 = vmatprep.subr.bf16.mxu0 0
  %1557 = vmatpush1.bf16.msra.mxu0 0
  %1558 = vmatprep.subr.bf16.mxu0 0
  %1559 = vmatpush1.bf16.msra.mxu0 0
  %1560 = vmatprep.subr.bf16.mxu0 0
  %1561 = vmatpush1.bf16.msra.mxu0 0
  %1562 = vmatprep.subr.bf16.mxu0 0
  %1563 = vmatpush1.bf16.msra.mxu0 0
  %1564 = vmatprep.subr.bf16.mxu0 0
  %1565 = vmatpush1.bf16.msra.mxu0 0
  %1566 = vmatprep.subr.bf16.mxu0 0
  %1567 = vmatpush1.bf16.msra.mxu0 0
  %1568 = vmatprep.subr.bf16.mxu0 0
  %1569 = vmatpush1.bf16.msra.mxu0 0
  %1570 = vmatprep.subr.bf16.mxu0 0
  %1571 = vmatpush1.bf16.msra.mxu0 0
  %1572 = vmatprep.subr.bf16.mxu0 0
  %1573 = vmatpush1.bf16.msra.mxu0 0
  %1574 = vmatprep.mubr.bf16.mxu0 0
  %1575 = vmatmul.mubr.bf16.gmra.mrb[0].mxu0 %v1540
  %v1576 = vpop.f32.mrb[0].mxu0
  %v1577 = vadd.f32 %v1422, %v1576
  %v1578 = vpop.f32.mrb[0].mxu0
  %v1579 = vadd.f32 %v1426, %v1578
  %v1580 = vpop.f32.mrb[0].mxu0
  %v1581 = vpop.f32.mrb[0].mxu0
  %1582 = vdwg.mxu0
  %1583 = vmatprep.subr.bf16.mxu0 %v1510
  %1584 = vmatpush1.bf16.msra.mxu0 %v1509
  %1585 = vmatprep.subr.bf16.mxu0 %v1518
  %1586 = vmatpush1.bf16.msra.mxu0 %v1517
  %1587 = vmatprep.subr.bf16.mxu0 0
  %1588 = vmatpush1.bf16.msra.mxu0 0
  %1589 = vmatprep.subr.bf16.mxu0 0
  %1590 = vmatpush1.bf16.msra.mxu0 0
  %1591 = vmatprep.subr.bf16.mxu0 0
  %1592 = vmatpush1.bf16.msra.mxu0 0
  %1593 = vmatprep.subr.bf16.mxu0 0
  %1594 = vmatpush1.bf16.msra.mxu0 0
  %1595 = vmatprep.subr.bf16.mxu0 0
  %1596 = vmatpush1.bf16.msra.mxu0 0
  %1597 = vmatprep.subr.bf16.mxu0 0
  %1598 = vmatpush1.bf16.msra.mxu0 0
  %1599 = vmatprep.subr.bf16.mxu0 0
  %1600 = vmatpush1.bf16.msra.mxu0 0
  %1601 = vmatprep.subr.bf16.mxu0 0
  %1602 = vmatpush1.bf16.msra.mxu0 0
  %1603 = vmatprep.subr.bf16.mxu0 0
  %1604 = vmatpush1.bf16.msra.mxu0 0
  %1605 = vmatprep.subr.bf16.mxu0 0
  %1606 = vmatpush1.bf16.msra.mxu0 0
  %1607 = vmatprep.subr.bf16.mxu0 0
  %1608 = vmatpush1.bf16.msra.mxu0 0
  %1609 = vmatprep.subr.bf16.mxu0 0
  %1610 = vmatpush1.bf16.msra.mxu0 0
  %1611 = vmatprep.subr.bf16.mxu0 0
  %1612 = vmatpush1.bf16.msra.mxu0 0
  %1613 = vmatprep.subr.bf16.mxu0 0
  %1614 = vmatpush1.bf16.msra.mxu0 0
  %1615 = vmatprep.mubr.bf16.mxu0 0
  %1616 = vmatmul.mubr.bf16.gmra.mrb[0].mxu0 %v1540
  %v1617 = vpop.f32.mrb[0].mxu0
  %v1618 = vadd.f32 %v1430, %v1617
  %v1619 = vpop.f32.mrb[0].mxu0
  %v1620 = vadd.f32 %v1434, %v1619
  %v1621 = vpop.f32.mrb[0].mxu0
  %v1622 = vpop.f32.mrb[0].mxu0
  %1623 = vdwg.mxu0
  %1624 = vmatprep.subr.bf16.mxu0 %v1512
  %1625 = vmatpush1.bf16.msra.mxu0 %v1511
  %1626 = vmatprep.subr.bf16.mxu0 %v1520
  %1627 = vmatpush1.bf16.msra.mxu0 %v1519
  %1628 = vmatprep.subr.bf16.mxu0 0
  %1629 = vmatpush1.bf16.msra.mxu0 0
  %1630 = vmatprep.subr.bf16.mxu0 0
  %1631 = vmatpush1.bf16.msra.mxu0 0
  %1632 = vmatprep.subr.bf16.mxu0 0
  %1633 = vmatpush1.bf16.msra.mxu0 0
  %1634 = vmatprep.subr.bf16.mxu0 0
  %1635 = vmatpush1.bf16.msra.mxu0 0
  %1636 = vmatprep.subr.bf16.mxu0 0
  %1637 = vmatpush1.bf16.msra.mxu0 0
  %1638 = vmatprep.subr.bf16.mxu0 0
  %1639 = vmatpush1.bf16.msra.mxu0 0
  %1640 = vmatprep.subr.bf16.mxu0 0
  %1641 = vmatpush1.bf16.msra.mxu0 0
  %1642 = vmatprep.subr.bf16.mxu0 0
  %1643 = vmatpush1.bf16.msra.mxu0 0
  %1644 = vmatprep.subr.bf16.mxu0 0
  %1645 = vmatpush1.bf16.msra.mxu0 0
  %1646 = vmatprep.subr.bf16.mxu0 0
  %1647 = vmatpush1.bf16.msra.mxu0 0
  %1648 = vmatprep.subr.bf16.mxu0 0
  %1649 = vmatpush1.bf16.msra.mxu0 0
  %1650 = vmatprep.subr.bf16.mxu0 0
  %1651 = vmatpush1.bf16.msra.mxu0 0
  %1652 = vmatprep.subr.bf16.mxu0 0
  %1653 = vmatpush1.bf16.msra.mxu0 0
  %1654 = vmatprep.subr.bf16.mxu0 0
  %1655 = vmatpush1.bf16.msra.mxu0 0
  %1656 = vmatprep.mubr.bf16.mxu0 0
  %1657 = vmatmul.mubr.bf16.gmra.mrb[0].mxu0 %v1540
  %v1658 = vpop.f32.mrb[0].mxu0
  %v1659 = vadd.f32 %v1438, %v1658
  %v1660 = vpop.f32.mrb[0].mxu0
  %v1661 = vadd.f32 %v1442, %v1660
  %v1662 = vpop.f32.mrb[0].mxu0
  %v1663 = vpop.f32.mrb[0].mxu0
  %1664 = vdwg.mxu0
  %1665 = vmatprep.subr.bf16.mxu0 %v1514
  %1666 = vmatpush1.bf16.msra.mxu0 %v1513
  %1667 = vmatprep.subr.bf16.mxu0 %v1522
  %1668 = vmatpush1.bf16.msra.mxu0 %v1521
  %1669 = vmatprep.subr.bf16.mxu0 0
  %1670 = vmatpush1.bf16.msra.mxu0 0
  %1671 = vmatprep.subr.bf16.mxu0 0
  %1672 = vmatpush1.bf16.msra.mxu0 0
  %1673 = vmatprep.subr.bf16.mxu0 0
  %1674 = vmatpush1.bf16.msra.mxu0 0
  %1675 = vmatprep.subr.bf16.mxu0 0
  %1676 = vmatpush1.bf16.msra.mxu0 0
  %1677 = vmatprep.subr.bf16.mxu0 0
  %1678 = vmatpush1.bf16.msra.mxu0 0
  %1679 = vmatprep.subr.bf16.mxu0 0
  %1680 = vmatpush1.bf16.msra.mxu0 0
  %1681 = vmatprep.subr.bf16.mxu0 0
  %1682 = vmatpush1.bf16.msra.mxu0 0
  %1683 = vmatprep.subr.bf16.mxu0 0
  %1684 = vmatpush1.bf16.msra.mxu0 0
  %1685 = vmatprep.subr.bf16.mxu0 0
  %1686 = vmatpush1.bf16.msra.mxu0 0
  %1687 = vmatprep.subr.bf16.mxu0 0
  %1688 = vmatpush1.bf16.msra.mxu0 0
  %1689 = vmatprep.subr.bf16.mxu0 0
  %1690 = vmatpush1.bf16.msra.mxu0 0
  %1691 = vmatprep.subr.bf16.mxu0 0
  %1692 = vmatpush1.bf16.msra.mxu0 0
  %1693 = vmatprep.subr.bf16.mxu0 0
  %1694 = vmatpush1.bf16.msra.mxu0 0
  %1695 = vmatprep.subr.bf16.mxu0 0
  %1696 = vmatpush1.bf16.msra.mxu0 0
  %1697 = vmatprep.mubr.bf16.mxu0 0
  %1698 = vmatmul.mubr.bf16.gmra.mrb[0].mxu0 %v1540
  %v1699 = vpop.f32.mrb[0].mxu0
  %v1700 = vadd.f32 %v1446, %v1699
  %v1701 = vpop.f32.mrb[0].mxu0
  %v1702 = vadd.f32 %v1450, %v1701
  %v1703 = vpop.f32.mrb[0].mxu0
  %v1704 = vpop.f32.mrb[0].mxu0
  %1705 = vdwg.mxu0
  %v1714 = vrot.slane %v1577, 6
  %v1715 = vrot.slane %v1579, 6
  %v1716 = vrot.slane %v1618, 6
  %v1717 = vrot.slane %v1620, 6
  %v1718 = vrot.slane %v1659, 6
  %v1719 = vrot.slane %v1661, 6
  %v1720 = vrot.slane %v1700, 6
  %v1721 = vrot.slane %v1702, 6
  %1730 = vst [vmem:[%s10] sm:$0xc] %v1714
  %1731 = vst [vmem:[%s10 + $0x8] sm:$0xc] %v1715
  %1732 = vst [vmem:[%s10 + $0x10] sm:$0xc] %v1716
  %1733 = vst [vmem:[%s10 + $0x18] sm:$0xc] %v1717
  %1734 = vst [vmem:[%s10 + $0x20] sm:$0xc] %v1718
  %1735 = vst [vmem:[%s10 + $0x28] sm:$0xc] %v1719
  %1736 = vst [vmem:[%s10 + $0x30] sm:$0xc] %v1720
  %1737 = vst [vmem:[%s10 + $0x38] sm:$0xc] %v1721
  // Predicated region
  $region42: #{hvae_forward.1} parent=0 // pred_check
    _
  $region43: #{hvae_forward.1} parent=0 // pred_check_branch
    %1739 = sbr.rel (0) target = $region45
  $region44: #{hvae_forward.1} parent=0 // pred_region
    _
  $region45: #{hvae_forward.1} parent=0 // pred_fallthru
    _
  // Predicated region
  $region46: #{hvae_forward.1} parent=0 // pred_check
    _
  $region47: #{hvae_forward.1} parent=0 // pred_check_branch
    %1741 = sbr.rel (0) target = $region49
  $region48: #{hvae_forward.1} parent=0 // pred_region
    _
  $region49: #{hvae_forward.1} parent=0 // pred_fallthru
    _

</llo_original>
